<compile_context>
chip_gen: v7x
topology: tpu7x:2x2x1
jax: 0.10.0
libtpu: 0.0.40
codegen_flags: <defaults>
</compile_context>

<pallas_src>
import jax
import jax.numpy as jnp
from jax.experimental import pallas as pl
from jax.experimental.pallas import tpu as pltpu

# ----- model dims (from SpikeNet.__init__ defaults) -----
INPUT_SIZE = 130                # len(feat_cols)
CAT_DIM = 42                    # len(feat_spike_index)
ALPHA = 0.6
EMB_DIM = int(CAT_DIM * ALPHA)  # 25
HIDDEN = 256
OUTPUT = 5                      # len(resp_cols)
BN_EPS = 1e-5
NEG_SLOPE = 0.01

OUT_PAD = 128   # lane-dense padded output width (5 -> 128), sliced outside


def _round_up(n, m):
    return ((n + m - 1) // m) * m


def spikenet_kernel(x_ref, xc_ref,
                    w1x_ref, w1c_ref, b1_ref,
                    w2x_ref, w2c_ref, w2h_ref, b2_ref,
                    w3a_ref, w3b_ref, b3_ref,
                    w4a_ref, w4b_ref, b4_ref,
                    out_ref):
    """Embedding + all BN affine ops are pre-folded into the (bf16) weights, so
    this is four matmul+bias layers (three with LeakyReLU). Dropout = identity
    (eval). Matmuls run on the MXU with bf16 operands / f32 accumulation; the
    elementwise epilogue (bias add, LeakyReLU) stays f32 for v5e's VPU."""
    dot = lambda a, b: jnp.dot(a, b, preferred_element_type=jnp.float32)
    leaky = lambda v: jnp.where(v > 0, v, NEG_SLOPE * v)
    bf16 = jnp.bfloat16

    x = x_ref[...].astype(bf16)          # (TM, 130)
    xc = xc_ref[...].astype(bf16)        # (TM, 42)

    x1 = leaky(dot(x, w1x_ref[...]) + dot(xc, w1c_ref[...]) + b1_ref[...])
    x1b = x1.astype(bf16)
    x2 = leaky(dot(x, w2x_ref[...]) + dot(xc, w2c_ref[...])
               + dot(x1b, w2h_ref[...]) + b2_ref[...])
    x2b = x2.astype(bf16)
    x3 = leaky(dot(x1b, w3a_ref[...]) + dot(x2b, w3b_ref[...]) + b3_ref[...])
    x3b = x3.astype(bf16)
    out_ref[...] = dot(x2b, w4a_ref[...]) + dot(x3b, w4b_ref[...]) + b4_ref[...]


def _fold_bn(gamma, beta, mean, var):
    scale = gamma / jnp.sqrt(var + BN_EPS)
    shift = beta - mean * scale
    return scale, shift


def prepare_params(p):
    """Fold the embedding Linear and all eval-mode BatchNorms into the dense
    weights/biases (exact algebra, done ONCE at parameter-load time).
    Weights are returned in bf16 for the MXU; biases stay f32 rows."""
    f32 = jnp.float32
    bf16 = jnp.bfloat16
    row = lambda v: v.reshape(1, -1).astype(f32)
    cast = lambda w: w.astype(bf16)

    s0, t0 = _fold_bn(*p["bn0"])                       # over (130 + 25) features
    s0a, t0a = s0[:INPUT_SIZE], t0[:INPUT_SIZE]
    s0b, t0b = s0[INPUT_SIZE:], t0[INPUT_SIZE:]
    s1, t1 = _fold_bn(*p["bn1"])
    s2, t2 = _fold_bn(*p["bn2"])
    s3, t3 = _fold_bn(*p["bn3"])

    wemb = p["emb_w"].T                                # (42, 25): emb = x_cat @ wemb + bemb
    bemb = p["emb_b"]

    # --- dense1 over concat([x, emb]); fold bn0 (rows) and bn1 (cols) ---
    w1 = p["d1_w"].T                                   # (155, 256)
    w1a, w1b = w1[:INPUT_SIZE], w1[INPUT_SIZE:]
    W1x = (w1a * s0a[:, None]) * s1[None, :]                       # (130, 256)
    W1c = (wemb @ (w1b * s0b[:, None])) * s1[None, :]              # (42, 256)
    B1 = (p["d1_b"] + t0a @ w1a + (t0b + bemb * s0b) @ w1b) * s1 + t1

    # --- dense2 over concat([x, emb, x1]); fold bn0 (rows) and bn2 (cols) ---
    w2 = p["d2_w"].T                                   # (411, 256)
    w2a = w2[:INPUT_SIZE]
    w2b = w2[INPUT_SIZE:INPUT_SIZE + EMB_DIM]
    w2c = w2[INPUT_SIZE + EMB_DIM:]
    W2x = (w2a * s0a[:, None]) * s2[None, :]                       # (130, 256)
    W2c = (wemb @ (w2b * s0b[:, None])) * s2[None, :]              # (42, 256)
    W2h = w2c * s2[None, :]                                        # (256, 256)
    B2 = (p["d2_b"] + t0a @ w2a + (t0b + bemb * s0b) @ w2b) * s2 + t2

    # --- dense3 over concat([x1, x2]); fold bn3 (cols) ---
    w3 = p["d3_w"].T                                   # (512, 256)
    W3a = w3[:HIDDEN] * s3[None, :]
    W3b = w3[HIDDEN:] * s3[None, :]
    B3 = p["d3_b"] * s3 + t3

    # --- dense4 over concat([x2, x3]); pad 5 -> 128 output lanes ---
    w4 = p["d4_w"].T                                   # (512, 5)
    w4p = jnp.zeros((2 * HIDDEN, OUT_PAD), f32).at[:, :OUTPUT].set(w4)
    W4a, W4b = w4p[:HIDDEN], w4p[HIDDEN:]
    B4 = jnp.zeros((OUT_PAD,), f32).at[:OUTPUT].set(p["d4_b"])

    return (cast(W1x), cast(W1c), row(B1),
            cast(W2x), cast(W2c), cast(W2h), row(B2),
            cast(W3a), cast(W3b), row(B3),
            cast(W4a), cast(W4b), row(B4))


def _choose_tm(B, block_b):
    TM = min(block_b, _round_up(B, 8))
    # v7x: keep >= 2 grid steps on the "parallel" batch axis so the second
    # TensorCore is not idle (no effect on single-TC v5e / v6e).
    if TM > 8 and _round_up(B, TM) // TM < 2:
        TM = _round_up(pl.cdiv(_round_up(B, 8), 2), 8)
    return TM


def spikenet_pallas(x, x_cat, folded, *, block_b=2048):
    """Forward pass. `folded` comes from prepare_params() (folded ONCE)."""
    B = x.shape[0]
    TM = _choose_tm(B, block_b)
    Bp = _round_up(B, TM)

    x = x.astype(jnp.float32)
    x_cat = x_cat.astype(jnp.float32)
    if Bp != B:
        # Row padding only when the batch does not divide the tile; padded rows
        # are bias-only garbage and sliced off below.
        x = jnp.pad(x, ((0, Bp - B), (0, 0)))
        x_cat = jnp.pad(x_cat, ((0, Bp - B), (0, 0)))

    # Weights/biases use constant index_maps so they stay VMEM-resident across
    # grid steps; activation tiles pipeline through VMEM.
    const_spec = lambda a: pl.BlockSpec(a.shape, lambda i: (0, 0))

    out = pl.pallas_call(
        spikenet_kernel,
        out_shape=jax.ShapeDtypeStruct((Bp, OUT_PAD), jnp.float32),
        grid=(Bp // TM,),
        in_specs=[pl.BlockSpec((TM, INPUT_SIZE), lambda i: (i, 0)),
                  pl.BlockSpec((TM, CAT_DIM), lambda i: (i, 0))]
                 + [const_spec(w) for w in folded],
        out_specs=pl.BlockSpec((TM, OUT_PAD), lambda i: (i, 0)),
        compiler_params=pltpu.CompilerParams(
            dimension_semantics=("parallel",)),     # v7x: shard batch over 2 TCs
    )(x, x_cat, *folded)

    # ~15 MB VMEM at TM=2048 (well inside the 32 MiB scoped default on all
    # generations). If TM is pushed to 4096+, set vmem_limit_bytes explicitly
    # (v7x only has 64 MiB physical VMEM).
    return out[:B, :OUTPUT]


def init_params(key):
    """Deterministic synthetic parameters with the same shapes as SpikeNet."""
    ks = iter(jax.random.split(key, 32))
    f32 = jnp.float32

    def lin(out_f, in_f):
        w = jax.random.normal(next(ks), (out_f, in_f), f32) * 0.05
        b = jax.random.normal(next(ks), (out_f,), f32) * 0.01
        return w, b

    def bn(n):
        gamma = 0.5 + jax.random.uniform(next(ks), (n,), f32)
        beta = jax.random.normal(next(ks), (n,), f32) * 0.05
        mean = jax.random.normal(next(ks), (n,), f32) * 0.1
        var = 0.5 + jax.random.uniform(next(ks), (n,), f32)
        return gamma, beta, mean, var

    p = {}
    p["emb_w"], p["emb_b"] = lin(EMB_DIM, CAT_DIM)
    p["bn0"] = bn(INPUT_SIZE + EMB_DIM)
    p["d1_w"], p["d1_b"] = lin(HIDDEN, INPUT_SIZE + EMB_DIM)
    p["bn1"] = bn(HIDDEN)
    p["d2_w"], p["d2_b"] = lin(HIDDEN, HIDDEN + INPUT_SIZE + EMB_DIM)
    p["bn2"] = bn(HIDDEN)
    p["d3_w"], p["d3_b"] = lin(HIDDEN, 2 * HIDDEN)
    p["bn3"] = bn(HIDDEN)
    p["d4_w"], p["d4_b"] = lin(OUTPUT, 2 * HIDDEN)
    return p


def spikenet_ref(x, x_cat, p):
    """Pure-JAX (f32) reference mirroring the torch forward (eval mode)."""
    leaky = lambda v: jnp.where(v > 0, v, NEG_SLOPE * v)
    lin = lambda v, w, b: v @ w.T + b
    bn = lambda v, prm: (v - prm[2]) / jnp.sqrt(prm[3] + BN_EPS) * prm[0] + prm[1]

    xc = lin(x_cat, p["emb_w"], p["emb_b"])
    x0 = bn(jnp.concatenate([x, xc], axis=1), p["bn0"])
    x1 = leaky(bn(lin(x0, p["d1_w"], p["d1_b"]), p["bn1"]))
    x2 = leaky(bn(lin(jnp.concatenate([x0, x1], 1), p["d2_w"], p["d2_b"]), p["bn2"]))
    x3 = leaky(bn(lin(jnp.concatenate([x1, x2], 1), p["d3_w"], p["d3_b"]), p["bn3"]))
    return lin(jnp.concatenate([x2, x3], 1), p["d4_w"], p["d4_b"])


if __name__ == "__main__":
    key = jax.random.PRNGKey(0)
    kx, kc, kp = jax.random.split(key, 3)
    params = init_params(kp)
    folded = prepare_params(params)          # fold once (hoisted out of forward)

    fwd = jax.jit(spikenet_pallas, static_argnames="block_b")

    # Tolerances are loosened vs the f32 version because matmul operands are
    # bf16 (f32 accumulation); the f32 reference remains the ground truth.
    RTOL, ATOL = 5e-2, 1e-1

    # Small check (single grid step).
    B = 8
    x = jax.random.normal(kx, (B, INPUT_SIZE), jnp.float32)
    x_cat = jax.random.normal(kc, (B, CAT_DIM), jnp.float32)
    out = jax.block_until_ready(fwd(x, x_cat, folded))
    ref = spikenet_ref(x, x_cat, params)
    assert out.shape == (B, OUTPUT)
    assert jnp.allclose(out, ref, rtol=RTOL, atol=ATOL), (
        f"max abs diff {jnp.max(jnp.abs(out - ref))}")

    # Larger, non-multiple batch: exercises batch tiling, row padding and the
    # >= 2 grid-step path (both TensorCores on v7x).
    B2 = 1000
    kx2, kc2 = jax.random.split(kx)
    x2 = jax.random.normal(kx2, (B2, INPUT_SIZE), jnp.float32)
    x_cat2 = jax.random.normal(kc2, (B2, CAT_DIM), jnp.float32)
    out2 = jax.block_until_ready(fwd(x2, x_cat2, folded, block_b=256))
    ref2 = spikenet_ref(x2, x_cat2, params)
    assert out2.shape == (B2, OUTPUT)
    assert jnp.allclose(out2, ref2, rtol=RTOL, atol=ATOL), (
        f"max abs diff {jnp.max(jnp.abs(out2 - ref2))}")

    # TODO(synk): optionally single-buffer the constant weight BlockSpecs via
    # pipeline_mode=pl.Buffered(1) if TM is ever pushed toward the VMEM limit.
    print("KERNEL_OK")
</pallas_src>

<mosaic_0001>
module attributes {stable_mosaic.version = 11 : i64} {
  func.func @spikenet_kernel(%arg0: i32, %arg1: memref<8x130xf32, #tpu.memory_space<vmem>>, %arg2: memref<8x42xf32, #tpu.memory_space<vmem>>, %arg3: memref<130x256xbf16, #tpu.memory_space<vmem>>, %arg4: memref<42x256xbf16, #tpu.memory_space<vmem>>, %arg5: memref<1x256xf32, #tpu.memory_space<vmem>>, %arg6: memref<130x256xbf16, #tpu.memory_space<vmem>>, %arg7: memref<42x256xbf16, #tpu.memory_space<vmem>>, %arg8: memref<256x256xbf16, #tpu.memory_space<vmem>>, %arg9: memref<1x256xf32, #tpu.memory_space<vmem>>, %arg10: memref<256x256xbf16, #tpu.memory_space<vmem>>, %arg11: memref<256x256xbf16, #tpu.memory_space<vmem>>, %arg12: memref<1x256xf32, #tpu.memory_space<vmem>>, %arg13: memref<256x128xbf16, #tpu.memory_space<vmem>>, %arg14: memref<256x128xbf16, #tpu.memory_space<vmem>>, %arg15: memref<1x128xf32, #tpu.memory_space<vmem>>, %arg16: memref<8x128xf32, #tpu.memory_space<vmem>>) attributes {dimension_semantics = [#tpu.dimension_semantics<parallel>], iteration_bounds = array<i64: 1>, scalar_prefetch = 0 : i64, scratch_operands = 0 : i64, tpu.core_type = #tpu.core_type<tc>, window_params = [{transform_indices = @transform_0, window_bounds = array<i64: 8, 130>}, {transform_indices = @transform_1, window_bounds = array<i64: 8, 42>}, {pipeline_mode = #tpu.pipeline_mode<synchronous>, transform_indices = @transform_2, window_bounds = array<i64: 130, 256>}, {pipeline_mode = #tpu.pipeline_mode<synchronous>, transform_indices = @transform_3, window_bounds = array<i64: 42, 256>}, {pipeline_mode = #tpu.pipeline_mode<synchronous>, transform_indices = @transform_4, window_bounds = array<i64: 1, 256>}, {pipeline_mode = #tpu.pipeline_mode<synchronous>, transform_indices = @transform_5, window_bounds = array<i64: 130, 256>}, {pipeline_mode = #tpu.pipeline_mode<synchronous>, transform_indices = @transform_6, window_bounds = array<i64: 42, 256>}, {pipeline_mode = #tpu.pipeline_mode<synchronous>, transform_indices = @transform_7, window_bounds = array<i64: 256, 256>}, {pipeline_mode = #tpu.pipeline_mode<synchronous>, transform_indices = @transform_8, window_bounds = array<i64: 1, 256>}, {pipeline_mode = #tpu.pipeline_mode<synchronous>, transform_indices = @transform_9, window_bounds = array<i64: 256, 256>}, {pipeline_mode = #tpu.pipeline_mode<synchronous>, transform_indices = @transform_10, window_bounds = array<i64: 256, 256>}, {pipeline_mode = #tpu.pipeline_mode<synchronous>, transform_indices = @transform_11, window_bounds = array<i64: 1, 256>}, {pipeline_mode = #tpu.pipeline_mode<synchronous>, transform_indices = @transform_12, window_bounds = array<i64: 256, 128>}, {pipeline_mode = #tpu.pipeline_mode<synchronous>, transform_indices = @transform_13, window_bounds = array<i64: 256, 128>}, {pipeline_mode = #tpu.pipeline_mode<synchronous>, transform_indices = @transform_14, window_bounds = array<i64: 1, 128>}, {transform_indices = @transform_15, window_bounds = array<i64: 8, 128>}]} {
    %c0 = arith.constant 0 : index
    %c0_0 = arith.constant 0 : index
    %0 = vector.load %arg1[%c0, %c0_0] : memref<8x130xf32, #tpu.memory_space<vmem>>, vector<8x130xf32>
    %1 = arith.truncf %0 : vector<8x130xf32> to vector<8x130xbf16>
    %c0_1 = arith.constant 0 : index
    %c0_2 = arith.constant 0 : index
    %2 = vector.load %arg2[%c0_1, %c0_2] : memref<8x42xf32, #tpu.memory_space<vmem>>, vector<8x42xf32>
    %3 = arith.truncf %2 : vector<8x42xf32> to vector<8x42xbf16>
    %c0_3 = arith.constant 0 : index
    %c0_4 = arith.constant 0 : index
    %4 = vector.load %arg3[%c0_3, %c0_4] : memref<130x256xbf16, #tpu.memory_space<vmem>>, vector<130x256xbf16>
    %cst = arith.constant dense<0.000000e+00> : vector<8x256xf32>
    %5 = tpu.matmul %1, %4, %cst {dimension_numbers = #tpu.dot_dimension_numbers<[1], [0], [0], [1], [0, 0, 1, 1], [], []>} : vector<8x130xbf16>, vector<130x256xbf16>, vector<8x256xf32> -> vector<8x256xf32>
    %c0_5 = arith.constant 0 : index
    %c0_6 = arith.constant 0 : index
    %6 = vector.load %arg4[%c0_5, %c0_6] : memref<42x256xbf16, #tpu.memory_space<vmem>>, vector<42x256xbf16>
    %cst_7 = arith.constant dense<0.000000e+00> : vector<8x256xf32>
    %7 = tpu.matmul %3, %6, %cst_7 {dimension_numbers = #tpu.dot_dimension_numbers<[1], [0], [0], [1], [0, 0, 1, 1], [], []>} : vector<8x42xbf16>, vector<42x256xbf16>, vector<8x256xf32> -> vector<8x256xf32>
    %8 = arith.addf %5, %7 : vector<8x256xf32>
    %c0_8 = arith.constant 0 : index
    %c0_9 = arith.constant 0 : index
    %9 = vector.load %arg5[%c0_8, %c0_9] : memref<1x256xf32, #tpu.memory_space<vmem>>, vector<1x256xf32>
    %10 = vector.broadcast %9 : vector<1x256xf32> to vector<8x256xf32>
    %11 = arith.addf %8, %10 : vector<8x256xf32>
    %cst_10 = arith.constant 0.000000e+00 : f32
    %12 = vector.broadcast %cst_10 : f32 to vector<8x256xf32>
    %13 = arith.cmpf ogt, %11, %12 : vector<8x256xf32>
    %cst_11 = arith.constant 0.00999999977 : f32
    %14 = vector.broadcast %cst_11 : f32 to vector<8x256xf32>
    %15 = arith.mulf %14, %11 : vector<8x256xf32>
    %16 = arith.select %13, %11, %15 : vector<8x256xi1>, vector<8x256xf32>
    %17 = arith.truncf %16 : vector<8x256xf32> to vector<8x256xbf16>
    %c0_12 = arith.constant 0 : index
    %c0_13 = arith.constant 0 : index
    %18 = vector.load %arg6[%c0_12, %c0_13] : memref<130x256xbf16, #tpu.memory_space<vmem>>, vector<130x256xbf16>
    %cst_14 = arith.constant dense<0.000000e+00> : vector<8x256xf32>
    %19 = tpu.matmul %1, %18, %cst_14 {dimension_numbers = #tpu.dot_dimension_numbers<[1], [0], [0], [1], [0, 0, 1, 1], [], []>} : vector<8x130xbf16>, vector<130x256xbf16>, vector<8x256xf32> -> vector<8x256xf32>
    %c0_15 = arith.constant 0 : index
    %c0_16 = arith.constant 0 : index
    %20 = vector.load %arg7[%c0_15, %c0_16] : memref<42x256xbf16, #tpu.memory_space<vmem>>, vector<42x256xbf16>
    %cst_17 = arith.constant dense<0.000000e+00> : vector<8x256xf32>
    %21 = tpu.matmul %3, %20, %cst_17 {dimension_numbers = #tpu.dot_dimension_numbers<[1], [0], [0], [1], [0, 0, 1, 1], [], []>} : vector<8x42xbf16>, vector<42x256xbf16>, vector<8x256xf32> -> vector<8x256xf32>
    %22 = arith.addf %19, %21 : vector<8x256xf32>
    %c0_18 = arith.constant 0 : index
    %c0_19 = arith.constant 0 : index
    %23 = vector.load %arg8[%c0_18, %c0_19] : memref<256x256xbf16, #tpu.memory_space<vmem>>, vector<256x256xbf16>
    %cst_20 = arith.constant dense<0.000000e+00> : vector<8x256xf32>
    %24 = tpu.matmul %17, %23, %cst_20 {dimension_numbers = #tpu.dot_dimension_numbers<[1], [0], [0], [1], [0, 0, 1, 1], [], []>} : vector<8x256xbf16>, vector<256x256xbf16>, vector<8x256xf32> -> vector<8x256xf32>
    %25 = arith.addf %22, %24 : vector<8x256xf32>
    %c0_21 = arith.constant 0 : index
    %c0_22 = arith.constant 0 : index
    %26 = vector.load %arg9[%c0_21, %c0_22] : memref<1x256xf32, #tpu.memory_space<vmem>>, vector<1x256xf32>
    %27 = vector.broadcast %26 : vector<1x256xf32> to vector<8x256xf32>
    %28 = arith.addf %25, %27 : vector<8x256xf32>
    %cst_23 = arith.constant 0.000000e+00 : f32
    %29 = vector.broadcast %cst_23 : f32 to vector<8x256xf32>
    %30 = arith.cmpf ogt, %28, %29 : vector<8x256xf32>
    %cst_24 = arith.constant 0.00999999977 : f32
    %31 = vector.broadcast %cst_24 : f32 to vector<8x256xf32>
    %32 = arith.mulf %31, %28 : vector<8x256xf32>
    %33 = arith.select %30, %28, %32 : vector<8x256xi1>, vector<8x256xf32>
    %34 = arith.truncf %33 : vector<8x256xf32> to vector<8x256xbf16>
    %c0_25 = arith.constant 0 : index
    %c0_26 = arith.constant 0 : index
    %35 = vector.load %arg10[%c0_25, %c0_26] : memref<256x256xbf16, #tpu.memory_space<vmem>>, vector<256x256xbf16>
    %cst_27 = arith.constant dense<0.000000e+00> : vector<8x256xf32>
    %36 = tpu.matmul %17, %35, %cst_27 {dimension_numbers = #tpu.dot_dimension_numbers<[1], [0], [0], [1], [0, 0, 1, 1], [], []>} : vector<8x256xbf16>, vector<256x256xbf16>, vector<8x256xf32> -> vector<8x256xf32>
    %c0_28 = arith.constant 0 : index
    %c0_29 = arith.constant 0 : index
    %37 = vector.load %arg11[%c0_28, %c0_29] : memref<256x256xbf16, #tpu.memory_space<vmem>>, vector<256x256xbf16>
    %cst_30 = arith.constant dense<0.000000e+00> : vector<8x256xf32>
    %38 = tpu.matmul %34, %37, %cst_30 {dimension_numbers = #tpu.dot_dimension_numbers<[1], [0], [0], [1], [0, 0, 1, 1], [], []>} : vector<8x256xbf16>, vector<256x256xbf16>, vector<8x256xf32> -> vector<8x256xf32>
    %39 = arith.addf %36, %38 : vector<8x256xf32>
    %c0_31 = arith.constant 0 : index
    %c0_32 = arith.constant 0 : index
    %40 = vector.load %arg12[%c0_31, %c0_32] : memref<1x256xf32, #tpu.memory_space<vmem>>, vector<1x256xf32>
    %41 = vector.broadcast %40 : vector<1x256xf32> to vector<8x256xf32>
    %42 = arith.addf %39, %41 : vector<8x256xf32>
    %cst_33 = arith.constant 0.000000e+00 : f32
    %43 = vector.broadcast %cst_33 : f32 to vector<8x256xf32>
    %44 = arith.cmpf ogt, %42, %43 : vector<8x256xf32>
    %cst_34 = arith.constant 0.00999999977 : f32
    %45 = vector.broadcast %cst_34 : f32 to vector<8x256xf32>
    %46 = arith.mulf %45, %42 : vector<8x256xf32>
    %47 = arith.select %44, %42, %46 : vector<8x256xi1>, vector<8x256xf32>
    %48 = arith.truncf %47 : vector<8x256xf32> to vector<8x256xbf16>
    %c0_35 = arith.constant 0 : index
    %c0_36 = arith.constant 0 : index
    %49 = vector.load %arg13[%c0_35, %c0_36] : memref<256x128xbf16, #tpu.memory_space<vmem>>, vector<256x128xbf16>
    %cst_37 = arith.constant dense<0.000000e+00> : vector<8x128xf32>
    %50 = tpu.matmul %34, %49, %cst_37 {dimension_numbers = #tpu.dot_dimension_numbers<[1], [0], [0], [1], [0, 0, 1, 1], [], []>} : vector<8x256xbf16>, vector<256x128xbf16>, vector<8x128xf32> -> vector<8x128xf32>
    %c0_38 = arith.constant 0 : index
    %c0_39 = arith.constant 0 : index
    %51 = vector.load %arg14[%c0_38, %c0_39] : memref<256x128xbf16, #tpu.memory_space<vmem>>, vector<256x128xbf16>
    %cst_40 = arith.constant dense<0.000000e+00> : vector<8x128xf32>
    %52 = tpu.matmul %48, %51, %cst_40 {dimension_numbers = #tpu.dot_dimension_numbers<[1], [0], [0], [1], [0, 0, 1, 1], [], []>} : vector<8x256xbf16>, vector<256x128xbf16>, vector<8x128xf32> -> vector<8x128xf32>
    %53 = arith.addf %50, %52 : vector<8x128xf32>
    %c0_41 = arith.constant 0 : index
    %c0_42 = arith.constant 0 : index
    %54 = vector.load %arg15[%c0_41, %c0_42] : memref<1x128xf32, #tpu.memory_space<vmem>>, vector<1x128xf32>
    %55 = vector.broadcast %54 : vector<1x128xf32> to vector<8x128xf32>
    %56 = arith.addf %53, %55 : vector<8x128xf32>
    %c0_43 = arith.constant 0 : index
    %c0_44 = arith.constant 0 : index
    %57 = vector.load %arg16[%c0_43, %c0_44] : memref<8x128xf32, #tpu.memory_space<vmem>>, vector<8x128xf32>
    tpu.vector_store %arg16[%c0_43, %c0_44], %56 {strides = array<i32>} : memref<8x128xf32, #tpu.memory_space<vmem>>, vector<8x128xf32>,
    return
  }
  func.func @transform_0(%arg0: i32) -> (i32, i32) {
    %c0_i32 = arith.constant 0 : i32
    %c0_i32_0 = arith.constant 0 : i32
    return %arg0, %c0_i32 : i32, i32
  }
  func.func @transform_1(%arg0: i32) -> (i32, i32) {
    %c0_i32 = arith.constant 0 : i32
    %c0_i32_0 = arith.constant 0 : i32
    return %arg0, %c0_i32 : i32, i32
  }
  func.func @transform_2(%arg0: i32) -> (i32, i32) {
    %c0_i32 = arith.constant 0 : i32
    %c0_i32_0 = arith.constant 0 : i32
    %c0_i32_1 = arith.constant 0 : i32
    return %c0_i32, %c0_i32_0 : i32, i32
  }
  func.func @transform_3(%arg0: i32) -> (i32, i32) {
    %c0_i32 = arith.constant 0 : i32
    %c0_i32_0 = arith.constant 0 : i32
    %c0_i32_1 = arith.constant 0 : i32
    return %c0_i32, %c0_i32_0 : i32, i32
  }
  func.func @transform_4(%arg0: i32) -> (i32, i32) {
    %c0_i32 = arith.constant 0 : i32
    %c0_i32_0 = arith.constant 0 : i32
    %c0_i32_1 = arith.constant 0 : i32
    return %c0_i32, %c0_i32_0 : i32, i32
  }
  func.func @transform_5(%arg0: i32) -> (i32, i32) {
    %c0_i32 = arith.constant 0 : i32
    %c0_i32_0 = arith.constant 0 : i32
    %c0_i32_1 = arith.constant 0 : i32
    return %c0_i32, %c0_i32_0 : i32, i32
  }
  func.func @transform_6(%arg0: i32) -> (i32, i32) {
    %c0_i32 = arith.constant 0 : i32
    %c0_i32_0 = arith.constant 0 : i32
    %c0_i32_1 = arith.constant 0 : i32
    return %c0_i32, %c0_i32_0 : i32, i32
  }
  func.func @transform_7(%arg0: i32) -> (i32, i32) {
    %c0_i32 = arith.constant 0 : i32
    %c0_i32_0 = arith.constant 0 : i32
    %c0_i32_1 = arith.constant 0 : i32
    return %c0_i32, %c0_i32_0 : i32, i32
  }
  func.func @transform_8(%arg0: i32) -> (i32, i32) {
    %c0_i32 = arith.constant 0 : i32
    %c0_i32_0 = arith.constant 0 : i32
    %c0_i32_1 = arith.constant 0 : i32
    return %c0_i32, %c0_i32_0 : i32, i32
  }
  func.func @transform_9(%arg0: i32) -> (i32, i32) {
    %c0_i32 = arith.constant 0 : i32
    %c0_i32_0 = arith.constant 0 : i32
    %c0_i32_1 = arith.constant 0 : i32
    return %c0_i32, %c0_i32_0 : i32, i32
  }
  func.func @transform_10(%arg0: i32) -> (i32, i32) {
    %c0_i32 = arith.constant 0 : i32
    %c0_i32_0 = arith.constant 0 : i32
    %c0_i32_1 = arith.constant 0 : i32
    return %c0_i32, %c0_i32_0 : i32, i32
  }
  func.func @transform_11(%arg0: i32) -> (i32, i32) {
    %c0_i32 = arith.constant 0 : i32
    %c0_i32_0 = arith.constant 0 : i32
    %c0_i32_1 = arith.constant 0 : i32
    return %c0_i32, %c0_i32_0 : i32, i32
  }
  func.func @transform_12(%arg0: i32) -> (i32, i32) {
    %c0_i32 = arith.constant 0 : i32
    %c0_i32_0 = arith.constant 0 : i32
    %c0_i32_1 = arith.constant 0 : i32
    return %c0_i32, %c0_i32_0 : i32, i32
  }
  func.func @transform_13(%arg0: i32) -> (i32, i32) {
    %c0_i32 = arith.constant 0 : i32
    %c0_i32_0 = arith.constant 0 : i32
    %c0_i32_1 = arith.constant 0 : i32
    return %c0_i32, %c0_i32_0 : i32, i32
  }
  func.func @transform_14(%arg0: i32) -> (i32, i32) {
    %c0_i32 = arith.constant 0 : i32
    %c0_i32_0 = arith.constant 0 : i32
    %c0_i32_1 = arith.constant 0 : i32
    return %c0_i32, %c0_i32_0 : i32, i32
  }
  func.func @transform_15(%arg0: i32) -> (i32, i32) {
    %c0_i32 = arith.constant 0 : i32
    %c0_i32_0 = arith.constant 0 : i32
    return %arg0, %c0_i32 : i32, i32
  }
}

</mosaic_0001>

<llo_original>
// kernel: spikenet_pallas.1
$region0: #{spikenet_pallas.1}
  #allocation0 [shape = 'u32[]', space=smem, size = 0x4, offset = 0x4, fixed_abs, tag = 'smem constant byte address 0x4 - core index']
  #allocation1 [shape = 'u32[144,128]{1,0:T(1,128)}', space=vmem, size = 0x12000, scoped, tag = 'internal scratch']
  %s0 = inlined_call_operand.hbm [shape: f32[8,130], index: 0, kind: input, shape index: {}]
  %s1 = inlined_call_operand.hbm [shape: f32[8,42], index: 1, kind: input, shape index: {}]
  %s2 = inlined_call_operand.hbm [shape: bf16[130,256], index: 2, kind: input, shape index: {}]
  %s3 = inlined_call_operand.hbm [shape: bf16[42,256], index: 3, kind: input, shape index: {}]
  %s4 = inlined_call_operand.vmem [shape: f32[1,256], index: 4, kind: input, shape index: {}]
  %s5 = inlined_call_operand.hbm [shape: bf16[130,256], index: 5, kind: input, shape index: {}]
  %s6 = inlined_call_operand.hbm [shape: bf16[42,256], index: 6, kind: input, shape index: {}]
  %s7 = inlined_call_operand.hbm [shape: bf16[256,256], index: 7, kind: input, shape index: {}]
  %s8 = inlined_call_operand.vmem [shape: f32[1,256], index: 8, kind: input, shape index: {}]
  %s9 = inlined_call_operand.hbm [shape: bf16[256,256], index: 9, kind: input, shape index: {}]
  %s10 = inlined_call_operand.hbm [shape: bf16[256,256], index: 10, kind: input, shape index: {}]
  %s11 = inlined_call_operand.vmem [shape: f32[1,256], index: 11, kind: input, shape index: {}]
  %s12 = inlined_call_operand.hbm [shape: bf16[256,128], index: 12, kind: input, shape index: {}]
  %s13 = inlined_call_operand.hbm [shape: bf16[256,128], index: 13, kind: input, shape index: {}]
  %s14 = inlined_call_operand.vmem [shape: f32[1,128], index: 14, kind: input, shape index: {}]
  %s15 = inlined_call_operand.hbm [shape: f32[8,128], index: 15, kind: output, shape index: {}]
  %s16 = sld [smem:[#allocation0]]
  $region114: #{spikenet_pallas.1} parent=0
    _
  %s18 = ssub.s32 1, %s16
  %s19 = scalar_select 0, %s18, %s16
  $region1: #{spikenet_pallas.1} parent=0
    #allocation2 [shape = 'u8[8192]{0}', space=vmem, size = 0x2000, scoped, tag = 'input window, operand 0, single buffered']
    #allocation3 [shape = 's32[1]{0}', space=sflag, size = 0x4, scoped, tag = 'scoped memory for spikenet_pallas.1']
    #allocation4 [shape = 's32[1]{0}', space=sflag, size = 0x4, scoped, tag = 'scoped memory for spikenet_pallas.1']
    #allocation5 [shape = 'u8[4096]{0}', space=vmem, size = 0x1000, scoped, tag = 'input window, operand 1, single buffered']
    #allocation6 [shape = 's32[1]{0}', space=sflag, size = 0x4, scoped, tag = 'scoped memory for spikenet_pallas.1']
    #allocation7 [shape = 'u8[69632]{0}', space=vmem, size = 0x11000, scoped, tag = 'input window, operand 2, single buffered']
    #allocation8 [shape = 'u8[24576]{0}', space=vmem, size = 0x6000, scoped, tag = 'input window, operand 3, single buffered']
    #allocation9 [shape = 's32[1]{0}', space=sflag, size = 0x4, scoped, tag = 'scoped memory for spikenet_pallas.1']
    #allocation10 [shape = 'u8[69632]{0}', space=vmem, size = 0x11000, scoped, tag = 'input window, operand 5, single buffered']
    #allocation11 [shape = 'u8[24576]{0}', space=vmem, size = 0x6000, scoped, tag = 'input window, operand 6, single buffered']
    #allocation12 [shape = 's32[1]{0}', space=sflag, size = 0x4, scoped, tag = 'scoped memory for spikenet_pallas.1']
    #allocation13 [shape = 'u8[131072]{0}', space=vmem, size = 0x20000, scoped, tag = 'input window, operand 7, single buffered']
    #allocation14 [shape = 'u8[131072]{0}', space=vmem, size = 0x20000, scoped, tag = 'input window, operand 9, single buffered']
    #allocation15 [shape = 's32[1]{0}', space=sflag, size = 0x4, scoped, tag = 'scoped memory for spikenet_pallas.1']
    #allocation16 [shape = 'u8[131072]{0}', space=vmem, size = 0x20000, scoped, tag = 'input window, operand 10, single buffered']
    #allocation17 [shape = 'u8[65536]{0}', space=vmem, size = 0x10000, scoped, tag = 'input window, operand 12, single buffered']
    #allocation18 [shape = 's32[1]{0}', space=sflag, size = 0x4, scoped, tag = 'scoped memory for spikenet_pallas.1']
    #allocation19 [shape = 'u8[65536]{0}', space=vmem, size = 0x10000, scoped, tag = 'input window, operand 13, single buffered']
    #allocation20 [shape = 'u8[4096]{0}', space=vmem, size = 0x1000, scoped, tag = 'output window, operand 0, single buffered']
    %20 = vsyncpa [#allocation3], 0
    %21 = vsyncpa [#allocation6], 0
    %22 = vsyncpa [#allocation9], 0
    %23 = vsyncpa [#allocation12], 0
    %24 = vsyncpa [#allocation15], 0
    %25 = vsyncpa [#allocation18], 0
    %26 = vsyncpa [#allocation4], 0
    // Predicated region
    $region2: #{spikenet_pallas.1} parent=1 // pred_check
      _
    $region3: #{spikenet_pallas.1} parent=1 // pred_check_branch
      %28 = sbr.rel (0) target = $region5
    $region4: #{spikenet_pallas.1} parent=1 // pred_region
      %s30 = ssub.s32 256, 256
      %31 = vsyncadd [#allocation3], %s30
      %s33 = sshll.u32 [#allocation2], 4
      %s34 = int_to_ptr.vmem [resolvable:$true] %s33
      %36 = dma.hbm_to_vmem [thread:$0]  %s0, 256, %s34, [#allocation3]
    $region5: #{spikenet_pallas.1} parent=1 // pred_fallthru
      _
    // Predicated region
    $region6: #{spikenet_pallas.1} parent=1 // pred_check
      _
    $region7: #{spikenet_pallas.1} parent=1 // pred_check_branch
      %38 = sbr.rel (0) target = $region9
    $region8: #{spikenet_pallas.1} parent=1 // pred_region
      %s40 = ssub.s32 128, 128
      %41 = vsyncadd [#allocation6], %s40
      %s43 = sshll.u32 [#allocation5], 4
      %s44 = int_to_ptr.vmem [resolvable:$true] %s43
      %46 = dma.hbm_to_vmem [thread:$0]  %s1, 128, %s44, [#allocation6]
    $region9: #{spikenet_pallas.1} parent=1 // pred_fallthru
      _
    // Predicated region
    $region10: #{spikenet_pallas.1} parent=1 // pred_check
      _
    $region11: #{spikenet_pallas.1} parent=1 // pred_check_branch
      %48 = sbr.rel (0) target = $region13
    $region12: #{spikenet_pallas.1} parent=1 // pred_region
      %s50 = ssub.s32 2176, 2176
      %51 = vsyncadd [#allocation6], %s50
      %s52 = sshll.u32 [#allocation7], 4
      %s53 = int_to_ptr.vmem [resolvable:$true] %s52
      %58 = dma.hbm_to_vmem [thread:$0]  %s2, 2176, %s53, [#allocation6], 128, 128, 8
    $region13: #{spikenet_pallas.1} parent=1 // pred_fallthru
      _
    // Predicated region
    $region14: #{spikenet_pallas.1} parent=1 // pred_check
      _
    $region15: #{spikenet_pallas.1} parent=1 // pred_check_branch
      %60 = sbr.rel (0) target = $region17
    $region16: #{spikenet_pallas.1} parent=1 // pred_region
      %s62 = ssub.s32 768, 768
      %63 = vsyncadd [#allocation9], %s62
      %s64 = sshll.u32 [#allocation8], 4
      %s65 = int_to_ptr.vmem [resolvable:$true] %s64
      %70 = dma.hbm_to_vmem [thread:$0]  %s3, 768, %s65, [#allocation9], 128, 128, 8
    $region17: #{spikenet_pallas.1} parent=1 // pred_fallthru
      _
    // Predicated region
    $region18: #{spikenet_pallas.1} parent=1 // pred_check
      _
    $region19: #{spikenet_pallas.1} parent=1 // pred_check_branch
      %72 = sbr.rel (0) target = $region21
    $region20: #{spikenet_pallas.1} parent=1 // pred_region
      _
    $region21: #{spikenet_pallas.1} parent=1 // pred_fallthru
      _
    // Predicated region
    $region22: #{spikenet_pallas.1} parent=1 // pred_check
      _
    $region23: #{spikenet_pallas.1} parent=1 // pred_check_branch
      %74 = sbr.rel (0) target = $region25
    $region24: #{spikenet_pallas.1} parent=1 // pred_region
      %s76 = ssub.s32 2176, 2176
      %77 = vsyncadd [#allocation9], %s76
      %s78 = sshll.u32 [#allocation10], 4
      %s79 = int_to_ptr.vmem [resolvable:$true] %s78
      %84 = dma.hbm_to_vmem [thread:$0]  %s5, 2176, %s79, [#allocation9], 128, 128, 8
    $region25: #{spikenet_pallas.1} parent=1 // pred_fallthru
      _
    // Predicated region
    $region26: #{spikenet_pallas.1} parent=1 // pred_check
      _
    $region27: #{spikenet_pallas.1} parent=1 // pred_check_branch
      %86 = sbr.rel (0) target = $region29
    $region28: #{spikenet_pallas.1} parent=1 // pred_region
      %s88 = ssub.s32 768, 768
      %89 = vsyncadd [#allocation12], %s88
      %s90 = sshll.u32 [#allocation11], 4
      %s91 = int_to_ptr.vmem [resolvable:$true] %s90
      %96 = dma.hbm_to_vmem [thread:$0]  %s6, 768, %s91, [#allocation12], 128, 128, 8
    $region29: #{spikenet_pallas.1} parent=1 // pred_fallthru
      _
    // Predicated region
    $region30: #{spikenet_pallas.1} parent=1 // pred_check
      _
    $region31: #{spikenet_pallas.1} parent=1 // pred_check_branch
      %98 = sbr.rel (0) target = $region33
    $region32: #{spikenet_pallas.1} parent=1 // pred_region
      %s100 = ssub.s32 4096, 4096
      %101 = vsyncadd [#allocation12], %s100
      %s102 = sshll.u32 [#allocation13], 4
      %s103 = int_to_ptr.vmem [resolvable:$true] %s102
      %108 = dma.hbm_to_vmem [thread:$0]  %s7, 4096, %s103, [#allocation12], 128, 128, 8
    $region33: #{spikenet_pallas.1} parent=1 // pred_fallthru
      _
    // Predicated region
    $region34: #{spikenet_pallas.1} parent=1 // pred_check
      _
    $region35: #{spikenet_pallas.1} parent=1 // pred_check_branch
      %110 = sbr.rel (0) target = $region37
    $region36: #{spikenet_pallas.1} parent=1 // pred_region
      _
    $region37: #{spikenet_pallas.1} parent=1 // pred_fallthru
      _
    // Predicated region
    $region38: #{spikenet_pallas.1} parent=1 // pred_check
      _
    $region39: #{spikenet_pallas.1} parent=1 // pred_check_branch
      %112 = sbr.rel (0) target = $region41
    $region40: #{spikenet_pallas.1} parent=1 // pred_region
      %s114 = ssub.s32 4096, 4096
      %115 = vsyncadd [#allocation15], %s114
      %s116 = sshll.u32 [#allocation14], 4
      %s117 = int_to_ptr.vmem [resolvable:$true] %s116
      %122 = dma.hbm_to_vmem [thread:$0]  %s9, 4096, %s117, [#allocation15], 128, 128, 8
    $region41: #{spikenet_pallas.1} parent=1 // pred_fallthru
      _
    // Predicated region
    $region42: #{spikenet_pallas.1} parent=1 // pred_check
      _
    $region43: #{spikenet_pallas.1} parent=1 // pred_check_branch
      %124 = sbr.rel (0) target = $region45
    $region44: #{spikenet_pallas.1} parent=1 // pred_region
      %s126 = ssub.s32 4096, 4096
      %127 = vsyncadd [#allocation15], %s126
      %s128 = sshll.u32 [#allocation16], 4
      %s129 = int_to_ptr.vmem [resolvable:$true] %s128
      %134 = dma.hbm_to_vmem [thread:$0]  %s10, 4096, %s129, [#allocation15], 128, 128, 8
    $region45: #{spikenet_pallas.1} parent=1 // pred_fallthru
      _
    // Predicated region
    $region46: #{spikenet_pallas.1} parent=1 // pred_check
      _
    $region47: #{spikenet_pallas.1} parent=1 // pred_check_branch
      %136 = sbr.rel (0) target = $region49
    $region48: #{spikenet_pallas.1} parent=1 // pred_region
      _
    $region49: #{spikenet_pallas.1} parent=1 // pred_fallthru
      _
    // Predicated region
    $region50: #{spikenet_pallas.1} parent=1 // pred_check
      _
    $region51: #{spikenet_pallas.1} parent=1 // pred_check_branch
      %138 = sbr.rel (0) target = $region53
    $region52: #{spikenet_pallas.1} parent=1 // pred_region
      %s140 = ssub.s32 2048, 2048
      %141 = vsyncadd [#allocation18], %s140
      %s142 = sshll.u32 [#allocation17], 4
      %s143 = int_to_ptr.vmem [resolvable:$true] %s142
      %148 = dma.hbm_to_vmem [thread:$0]  %s12, 2048, %s143, [#allocation18], 64, 64, 4
    $region53: #{spikenet_pallas.1} parent=1 // pred_fallthru
      _
    // Predicated region
    $region54: #{spikenet_pallas.1} parent=1 // pred_check
      _
    $region55: #{spikenet_pallas.1} parent=1 // pred_check_branch
      %150 = sbr.rel (0) target = $region57
    $region56: #{spikenet_pallas.1} parent=1 // pred_region
      %s152 = ssub.s32 2048, 2048
      %153 = vsyncadd [#allocation18], %s152
      %s154 = sshll.u32 [#allocation19], 4
      %s155 = int_to_ptr.vmem [resolvable:$true] %s154
      %160 = dma.hbm_to_vmem [thread:$0]  %s13, 2048, %s155, [#allocation18], 64, 64, 4
    $region57: #{spikenet_pallas.1} parent=1 // pred_fallthru
      _
    // Predicated region
    $region58: #{spikenet_pallas.1} parent=1 // pred_check
      _
    $region59: #{spikenet_pallas.1} parent=1 // pred_check_branch
      %162 = sbr.rel (0) target = $region61
    $region60: #{spikenet_pallas.1} parent=1 // pred_region
      _
    $region61: #{spikenet_pallas.1} parent=1 // pred_fallthru
      _
    // Predicated region
    $region62: #{spikenet_pallas.1} parent=1 // pred_check
      _
    $region63: #{spikenet_pallas.1} parent=1 // pred_check_branch
      %164 = sbr.rel (0) target = $region65
    $region64: #{spikenet_pallas.1} parent=1 // pred_region
      %165 = dma.done [#allocation3], 256
    $region65: #{spikenet_pallas.1} parent=1 // pred_fallthru
      _
    // Predicated region
    $region66: #{spikenet_pallas.1} parent=1 // pred_check
      _
    $region67: #{spikenet_pallas.1} parent=1 // pred_check_branch
      %167 = sbr.rel (0) target = $region69
    $region68: #{spikenet_pallas.1} parent=1 // pred_region
      %168 = dma.done [#allocation6], 128
    $region69: #{spikenet_pallas.1} parent=1 // pred_fallthru
      _
    // Predicated region
    $region70: #{spikenet_pallas.1} parent=1 // pred_check
      _
    $region71: #{spikenet_pallas.1} parent=1 // pred_check_branch
      %170 = sbr.rel (0) target = $region73
    $region72: #{spikenet_pallas.1} parent=1 // pred_region
      %171 = dma.done [#allocation6], 2176
    $region73: #{spikenet_pallas.1} parent=1 // pred_fallthru
      _
    // Predicated region
    $region74: #{spikenet_pallas.1} parent=1 // pred_check
      _
    $region75: #{spikenet_pallas.1} parent=1 // pred_check_branch
      %173 = sbr.rel (0) target = $region77
    $region76: #{spikenet_pallas.1} parent=1 // pred_region
      %174 = dma.done [#allocation9], 768
    $region77: #{spikenet_pallas.1} parent=1 // pred_fallthru
      _
    // Predicated region
    $region78: #{spikenet_pallas.1} parent=1 // pred_check
      _
    $region79: #{spikenet_pallas.1} parent=1 // pred_check_branch
      %176 = sbr.rel (0) target = $region81
    $region80: #{spikenet_pallas.1} parent=1 // pred_region
      %177 = dma.done [#allocation9], 2176
    $region81: #{spikenet_pallas.1} parent=1 // pred_fallthru
      _
    // Predicated region
    $region82: #{spikenet_pallas.1} parent=1 // pred_check
      _
    $region83: #{spikenet_pallas.1} parent=1 // pred_check_branch
      %179 = sbr.rel (0) target = $region85
    $region84: #{spikenet_pallas.1} parent=1 // pred_region
      %180 = dma.done [#allocation12], 768
    $region85: #{spikenet_pallas.1} parent=1 // pred_fallthru
      _
    // Predicated region
    $region86: #{spikenet_pallas.1} parent=1 // pred_check
      _
    $region87: #{spikenet_pallas.1} parent=1 // pred_check_branch
      %182 = sbr.rel (0) target = $region89
    $region88: #{spikenet_pallas.1} parent=1 // pred_region
      %183 = dma.done [#allocation12], 4096
    $region89: #{spikenet_pallas.1} parent=1 // pred_fallthru
      _
    // Predicated region
    $region90: #{spikenet_pallas.1} parent=1 // pred_check
      _
    $region91: #{spikenet_pallas.1} parent=1 // pred_check_branch
      %185 = sbr.rel (0) target = $region93
    $region92: #{spikenet_pallas.1} parent=1 // pred_region
      %186 = dma.done [#allocation15], 4096
    $region93: #{spikenet_pallas.1} parent=1 // pred_fallthru
      _
    // Predicated region
    $region94: #{spikenet_pallas.1} parent=1 // pred_check
      _
    $region95: #{spikenet_pallas.1} parent=1 // pred_check_branch
      %188 = sbr.rel (0) target = $region97
    $region96: #{spikenet_pallas.1} parent=1 // pred_region
      %189 = dma.done [#allocation15], 4096
    $region97: #{spikenet_pallas.1} parent=1 // pred_fallthru
      _
    // Predicated region
    $region98: #{spikenet_pallas.1} parent=1 // pred_check
      _
    $region99: #{spikenet_pallas.1} parent=1 // pred_check_branch
      %191 = sbr.rel (0) target = $region101
    $region100: #{spikenet_pallas.1} parent=1 // pred_region
      %192 = dma.done [#allocation18], 2048
    $region101: #{spikenet_pallas.1} parent=1 // pred_fallthru
      _
    // Predicated region
    $region102: #{spikenet_pallas.1} parent=1 // pred_check
      _
    $region103: #{spikenet_pallas.1} parent=1 // pred_check_branch
      %194 = sbr.rel (0) target = $region105
    $region104: #{spikenet_pallas.1} parent=1 // pred_region
      %195 = dma.done [#allocation18], 2048
    $region105: #{spikenet_pallas.1} parent=1 // pred_fallthru
      _
    %v197 = vld [vmem:[#allocation2] sm:$0xff]
    %v198 = vld [vmem:[#allocation2 + $0x8] sm:$0xff]
    %v199 = vpack.c.bf16 %v197, %v197
    %v200 = vpack.c.bf16 %v198, %v198
    %v201 = vld [vmem:[#allocation5] sm:$0xff]
    %v202 = vpack.c.bf16 %v201, %v201
    %v203 = vld [vmem:[#allocation7] sm:$0xff]
    %v204 = vld [vmem:[#allocation7 + $0x8] sm:$0xff]
    %v205 = vld [vmem:[#allocation7 + $0x10] sm:$0xff]
    %v206 = vld [vmem:[#allocation7 + $0x18] sm:$0xff]
    %v207 = vld [vmem:[#allocation7 + $0x20] sm:$0xff]
    %v208 = vld [vmem:[#allocation7 + $0x28] sm:$0xff]
    %v209 = vld [vmem:[#allocation7 + $0x30] sm:$0xff]
    %v210 = vld [vmem:[#allocation7 + $0x38] sm:$0xff]
    %v211 = vld [vmem:[#allocation7 + $0x40] sm:$0xff]
    %v212 = vld [vmem:[#allocation7 + $0x48] sm:$0xff]
    %v213 = vld [vmem:[#allocation7 + $0x50] sm:$0xff]
    %v214 = vld [vmem:[#allocation7 + $0x58] sm:$0xff]
    %v215 = vld [vmem:[#allocation7 + $0x60] sm:$0xff]
    %v216 = vld [vmem:[#allocation7 + $0x68] sm:$0xff]
    %v217 = vld [vmem:[#allocation7 + $0x70] sm:$0xff]
    %v218 = vld [vmem:[#allocation7 + $0x78] sm:$0xff]
    %v219 = vld [vmem:[#allocation7 + $0x80] sm:$0x11]
    %v220 = vld [vmem:[#allocation8] sm:$0xff]
    %v221 = vld [vmem:[#allocation8 + $0x8] sm:$0xff]
    %v222 = vld [vmem:[#allocation8 + $0x10] sm:$0xff]
    %v223 = vld [vmem:[#allocation8 + $0x18] sm:$0xff]
    %v224 = vld [vmem:[#allocation8 + $0x20] sm:$0xff]
    %v225 = vld [vmem:[#allocation8 + $0x28] sm:$0x11]
    %v232 = vunpack.c.l.b16 %v220
    %v233 = vunpack.c.h.b16 %v220
    %v234 = vunpack.c.l.b16 %v221
    %v235 = vunpack.c.h.b16 %v221
    %v236 = vunpack.c.l.b16 %v222
    %v237 = vunpack.c.h.b16 %v222
    %v238 = vunpack.c.l.b16 %v223
    %v239 = vunpack.c.h.b16 %v223
    %v240 = vunpack.c.l.b16 %v224
    %v241 = vunpack.c.h.b16 %v224
    %v242 = vunpack.c.l.b16 %v225
    %v243 = vunpack.c.h.b16 %v225
    %v244 = vpack.c.b16 %v234, %v232
    %v245 = vpack.c.b16 %v235, %v233
    %v246 = vpack.c.b16 %v238, %v236
    %v247 = vpack.c.b16 %v239, %v237
    %v248 = vpack.c.b16 %v242, %v240
    %v249 = vpack.c.b16 %v243, %v241
    %vm254 = vcmask 343040
    %v256 = vsel %vm254, %v202, 0
    %vm258 = vcmask 1044480
    %v260 = vsel %vm258, %v248, 0
    %v263 = vsel %vm258, %v249, 0
    %265 = vmatprep.subr.bf16.mxu0 %v245
    %266 = vmatpush1.bf16.msra.mxu0 %v244
    %267 = vmatprep.subr.bf16.mxu0 %v247
    %268 = vmatpush1.bf16.msra.mxu0 %v246
    %269 = vmatprep.subr.bf16.mxu0 %v263
    %270 = vmatpush1.bf16.msra.mxu0 %v260
    %271 = vmatprep.subr.bf16.mxu0 0
    %272 = vmatpush1.bf16.msra.mxu0 0
    %273 = vmatprep.subr.bf16.mxu0 0
    %274 = vmatpush1.bf16.msra.mxu0 0
    %275 = vmatprep.subr.bf16.mxu0 0
    %276 = vmatpush1.bf16.msra.mxu0 0
    %277 = vmatprep.subr.bf16.mxu0 0
    %278 = vmatpush1.bf16.msra.mxu0 0
    %279 = vmatprep.subr.bf16.mxu0 0
    %280 = vmatpush1.bf16.msra.mxu0 0
    %281 = vmatprep.subr.bf16.mxu0 0
    %282 = vmatpush1.bf16.msra.mxu0 0
    %283 = vmatprep.subr.bf16.mxu0 0
    %284 = vmatpush1.bf16.msra.mxu0 0
    %285 = vmatprep.subr.bf16.mxu0 0
    %286 = vmatpush1.bf16.msra.mxu0 0
    %287 = vmatprep.subr.bf16.mxu0 0
    %288 = vmatpush1.bf16.msra.mxu0 0
    %289 = vmatprep.subr.bf16.mxu0 0
    %290 = vmatpush1.bf16.msra.mxu0 0
    %291 = vmatprep.subr.bf16.mxu0 0
    %292 = vmatpush1.bf16.msra.mxu0 0
    %293 = vmatprep.subr.bf16.mxu0 0
    %294 = vmatpush1.bf16.msra.mxu0 0
    %295 = vmatprep.subr.bf16.mxu0 0
    %296 = vmatpush1.bf16.msra.mxu0 0
    %297 = vmatprep.mubr.bf16.mxu0 0
    %298 = vmatmul.mubr.bf16.gmra.mrb[0].mxu0 %v256
    %v299 = vpop.f32.mrb[0].mxu0
    %v300 = vadd.f32 0.0, %v299
    %v301 = vpop.f32.mrb[0].mxu0
    %v302 = vadd.f32 0.0, %v301
    %v303 = vpop.f32.mrb[0].mxu0
    %v304 = vpop.f32.mrb[0].mxu0
    %305 = vdwg.mxu0
    %v323 = vunpack.c.l.b16 %v203
    %v324 = vunpack.c.h.b16 %v203
    %v325 = vunpack.c.l.b16 %v204
    %v326 = vunpack.c.h.b16 %v204
    %v327 = vunpack.c.l.b16 %v205
    %v328 = vunpack.c.h.b16 %v205
    %v329 = vunpack.c.l.b16 %v206
    %v330 = vunpack.c.h.b16 %v206
    %v331 = vunpack.c.l.b16 %v207
    %v332 = vunpack.c.h.b16 %v207
    %v333 = vunpack.c.l.b16 %v208
    %v334 = vunpack.c.h.b16 %v208
    %v335 = vunpack.c.l.b16 %v209
    %v336 = vunpack.c.h.b16 %v209
    %v337 = vunpack.c.l.b16 %v210
    %v338 = vunpack.c.h.b16 %v210
    %v339 = vunpack.c.l.b16 %v211
    %v340 = vunpack.c.h.b16 %v211
    %v341 = vunpack.c.l.b16 %v212
    %v342 = vunpack.c.h.b16 %v212
    %v343 = vunpack.c.l.b16 %v213
    %v344 = vunpack.c.h.b16 %v213
    %v345 = vunpack.c.l.b16 %v214
    %v346 = vunpack.c.h.b16 %v214
    %v347 = vunpack.c.l.b16 %v215
    %v348 = vunpack.c.h.b16 %v215
    %v349 = vunpack.c.l.b16 %v216
    %v350 = vunpack.c.h.b16 %v216
    %v351 = vunpack.c.l.b16 %v217
    %v352 = vunpack.c.h.b16 %v217
    %v353 = vunpack.c.l.b16 %v218
    %v354 = vunpack.c.h.b16 %v218
    %v355 = vunpack.c.l.b16 %v219
    %v356 = vunpack.c.h.b16 %v219
    %v357 = vpack.c.b16 %v325, %v323
    %v358 = vpack.c.b16 %v326, %v324
    %v359 = vpack.c.b16 %v329, %v327
    %v360 = vpack.c.b16 %v330, %v328
    %v361 = vpack.c.b16 %v333, %v331
    %v362 = vpack.c.b16 %v334, %v332
    %v363 = vpack.c.b16 %v337, %v335
    %v364 = vpack.c.b16 %v338, %v336
    %v365 = vpack.c.b16 %v341, %v339
    %v366 = vpack.c.b16 %v342, %v340
    %v367 = vpack.c.b16 %v345, %v343
    %v368 = vpack.c.b16 %v346, %v344
    %v369 = vpack.c.b16 %v349, %v347
    %v370 = vpack.c.b16 %v350, %v348
    %v371 = vpack.c.b16 %v353, %v351
    %v372 = vpack.c.b16 %v354, %v352
    %v373 = vpack.c.b16 %v355, %v355
    %v374 = vpack.c.b16 %v356, %v356
    %vm391 = vcmask 15360
    %v393 = vsel %vm391, %v200, 0
    %vm395 = vcmask 1040384
    %v397 = vsel %vm395, %v373, 0
    %v400 = vsel %vm395, %v374, 0
    %402 = vmatprep.subr.bf16.mxu0 %v358
    %403 = vmatpush1.bf16.msra.mxu0 %v357
    %404 = vmatprep.subr.bf16.mxu0 %v360
    %405 = vmatpush1.bf16.msra.mxu0 %v359
    %406 = vmatprep.subr.bf16.mxu0 %v362
    %407 = vmatpush1.bf16.msra.mxu0 %v361
    %408 = vmatprep.subr.bf16.mxu0 %v364
    %409 = vmatpush1.bf16.msra.mxu0 %v363
    %410 = vmatprep.subr.bf16.mxu0 %v366
    %411 = vmatpush1.bf16.msra.mxu0 %v365
    %412 = vmatprep.subr.bf16.mxu0 %v368
    %413 = vmatpush1.bf16.msra.mxu0 %v367
    %414 = vmatprep.subr.bf16.mxu0 %v370
    %415 = vmatpush1.bf16.msra.mxu0 %v369
    %416 = vmatprep.subr.bf16.mxu0 %v372
    %417 = vmatpush1.bf16.msra.mxu0 %v371
    %418 = vmatprep.subr.bf16.mxu0 %v400
    %419 = vmatpush1.bf16.msra.mxu0 %v397
    %420 = vmatprep.subr.bf16.mxu0 0
    %421 = vmatpush1.bf16.msra.mxu0 0
    %422 = vmatprep.subr.bf16.mxu0 0
    %423 = vmatpush1.bf16.msra.mxu0 0
    %424 = vmatprep.subr.bf16.mxu0 0
    %425 = vmatpush1.bf16.msra.mxu0 0
    %426 = vmatprep.subr.bf16.mxu0 0
    %427 = vmatpush1.bf16.msra.mxu0 0
    %428 = vmatprep.subr.bf16.mxu0 0
    %429 = vmatpush1.bf16.msra.mxu0 0
    %430 = vmatprep.subr.bf16.mxu0 0
    %431 = vmatpush1.bf16.msra.mxu0 0
    %432 = vmatprep.subr.bf16.mxu0 0
    %433 = vmatpush1.bf16.msra.mxu0 0
    %434 = vmatprep.mubr.bf16.mxu0 %v393
    %435 = vmatmul.mubr.bf16.gmra.mrb[0].mxu0 %v199
    %v436 = vpop.f32.mrb[0].mxu0
    %v437 = vadd.f32 %v300, %v436
    %v438 = vpop.f32.mrb[0].mxu0
    %v439 = vadd.f32 %v302, %v438
    %v440 = vpop.f32.mrb[0].mxu0
    %v441 = vpop.f32.mrb[0].mxu0
    %442 = vdwg.mxu0
    %v443 = vld [vmem:[%s4] sm:$0x3]
    %v445 = vlaneseq
    %v446 = vshrl.u32 %v445, 7
    %v447 = vsub.s32 0, %v446
    %v448 = vrot.slane %v443, %v447
    %v449 = vlaneseq
    %v450 = vshrl.u32 %v449, 7
    %v451 = vsub.s32 1, %v450
    %v452 = vrot.slane %v443, %v451
    %v455 = vadd.f32 %v437, %v448
    %v456 = vadd.f32 %v439, %v452
    %vm457 = vcmp.gt.f32.partialorder %v455, 0.0
    %vm458 = vcmp.gt.f32.partialorder %v456, 0.0
    %v459 = vmul.f32 %v455, 0.01
    %v460 = vmul.f32 %v456, 0.01
    %v461 = vsel %vm457, %v455, %v459
    %v462 = vsel %vm458, %v456, %v460
    %v463 = vpack.c.bf16 %v461, %v461
    %v464 = vpack.c.bf16 %v462, %v462
    %v465 = vld [vmem:[#allocation10] sm:$0xff]
    %v466 = vld [vmem:[#allocation10 + $0x8] sm:$0xff]
    %v467 = vld [vmem:[#allocation10 + $0x10] sm:$0xff]
    %v468 = vld [vmem:[#allocation10 + $0x18] sm:$0xff]
    %v469 = vld [vmem:[#allocation10 + $0x20] sm:$0xff]
    %v470 = vld [vmem:[#allocation10 + $0x28] sm:$0xff]
    %v471 = vld [vmem:[#allocation10 + $0x30] sm:$0xff]
    %v472 = vld [vmem:[#allocation10 + $0x38] sm:$0xff]
    %v473 = vld [vmem:[#allocation10 + $0x40] sm:$0xff]
    %v474 = vld [vmem:[#allocation10 + $0x48] sm:$0xff]
    %v475 = vld [vmem:[#allocation10 + $0x50] sm:$0xff]
    %v476 = vld [vmem:[#allocation10 + $0x58] sm:$0xff]
    %v477 = vld [vmem:[#allocation10 + $0x60] sm:$0xff]
    %v478 = vld [vmem:[#allocation10 + $0x68] sm:$0xff]
    %v479 = vld [vmem:[#allocation10 + $0x70] sm:$0xff]
    %v480 = vld [vmem:[#allocation10 + $0x78] sm:$0xff]
    %v481 = vld [vmem:[#allocation10 + $0x80] sm:$0x11]
    %v482 = vld [vmem:[#allocation11] sm:$0xff]
    %v483 = vld [vmem:[#allocation11 + $0x8] sm:$0xff]
    %v484 = vld [vmem:[#allocation11 + $0x10] sm:$0xff]
    %v485 = vld [vmem:[#allocation11 + $0x18] sm:$0xff]
    %v486 = vld [vmem:[#allocation11 + $0x20] sm:$0xff]
    %v487 = vld [vmem:[#allocation11 + $0x28] sm:$0x11]
    %v494 = vunpack.c.l.b16 %v482
    %v495 = vunpack.c.h.b16 %v482
    %v496 = vunpack.c.l.b16 %v483
    %v497 = vunpack.c.h.b16 %v483
    %v498 = vunpack.c.l.b16 %v484
    %v499 = vunpack.c.h.b16 %v484
    %v500 = vunpack.c.l.b16 %v485
    %v501 = vunpack.c.h.b16 %v485
    %v502 = vunpack.c.l.b16 %v486
    %v503 = vunpack.c.h.b16 %v486
    %v504 = vunpack.c.l.b16 %v487
    %v505 = vunpack.c.h.b16 %v487
    %v506 = vpack.c.b16 %v496, %v494
    %v507 = vpack.c.b16 %v497, %v495
    %v508 = vpack.c.b16 %v500, %v498
    %v509 = vpack.c.b16 %v501, %v499
    %v510 = vpack.c.b16 %v504, %v502
    %v511 = vpack.c.b16 %v505, %v503
    %v517 = vsel %vm258, %v510, 0
    %v520 = vsel %vm258, %v511, 0
    %522 = vmatprep.subr.bf16.mxu0 %v507
    %523 = vmatpush1.bf16.msra.mxu0 %v506
    %524 = vmatprep.subr.bf16.mxu0 %v509
    %525 = vmatpush1.bf16.msra.mxu0 %v508
    %526 = vmatprep.subr.bf16.mxu0 %v520
    %527 = vmatpush1.bf16.msra.mxu0 %v517
    %528 = vmatprep.subr.bf16.mxu0 0
    %529 = vmatpush1.bf16.msra.mxu0 0
    %530 = vmatprep.subr.bf16.mxu0 0
    %531 = vmatpush1.bf16.msra.mxu0 0
    %532 = vmatprep.subr.bf16.mxu0 0
    %533 = vmatpush1.bf16.msra.mxu0 0
    %534 = vmatprep.subr.bf16.mxu0 0
    %535 = vmatpush1.bf16.msra.mxu0 0
    %536 = vmatprep.subr.bf16.mxu0 0
    %537 = vmatpush1.bf16.msra.mxu0 0
    %538 = vmatprep.subr.bf16.mxu0 0
    %539 = vmatpush1.bf16.msra.mxu0 0
    %540 = vmatprep.subr.bf16.mxu0 0
    %541 = vmatpush1.bf16.msra.mxu0 0
    %542 = vmatprep.subr.bf16.mxu0 0
    %543 = vmatpush1.bf16.msra.mxu0 0
    %544 = vmatprep.subr.bf16.mxu0 0
    %545 = vmatpush1.bf16.msra.mxu0 0
    %546 = vmatprep.subr.bf16.mxu0 0
    %547 = vmatpush1.bf16.msra.mxu0 0
    %548 = vmatprep.subr.bf16.mxu0 0
    %549 = vmatpush1.bf16.msra.mxu0 0
    %550 = vmatprep.subr.bf16.mxu0 0
    %551 = vmatpush1.bf16.msra.mxu0 0
    %552 = vmatprep.subr.bf16.mxu0 0
    %553 = vmatpush1.bf16.msra.mxu0 0
    %554 = vmatprep.mubr.bf16.mxu0 0
    %555 = vmatmul.mubr.bf16.gmra.mrb[0].mxu0 %v256
    %v556 = vpop.f32.mrb[0].mxu0
    %v557 = vadd.f32 0.0, %v556
    %v558 = vpop.f32.mrb[0].mxu0
    %v559 = vadd.f32 0.0, %v558
    %v560 = vpop.f32.mrb[0].mxu0
    %v561 = vpop.f32.mrb[0].mxu0
    %562 = vdwg.mxu0
    %v580 = vunpack.c.l.b16 %v465
    %v581 = vunpack.c.h.b16 %v465
    %v582 = vunpack.c.l.b16 %v466
    %v583 = vunpack.c.h.b16 %v466
    %v584 = vunpack.c.l.b16 %v467
    %v585 = vunpack.c.h.b16 %v467
    %v586 = vunpack.c.l.b16 %v468
    %v587 = vunpack.c.h.b16 %v468
    %v588 = vunpack.c.l.b16 %v469
    %v589 = vunpack.c.h.b16 %v469
    %v590 = vunpack.c.l.b16 %v470
    %v591 = vunpack.c.h.b16 %v470
    %v592 = vunpack.c.l.b16 %v471
    %v593 = vunpack.c.h.b16 %v471
    %v594 = vunpack.c.l.b16 %v472
    %v595 = vunpack.c.h.b16 %v472
    %v596 = vunpack.c.l.b16 %v473
    %v597 = vunpack.c.h.b16 %v473
    %v598 = vunpack.c.l.b16 %v474
    %v599 = vunpack.c.h.b16 %v474
    %v600 = vunpack.c.l.b16 %v475
    %v601 = vunpack.c.h.b16 %v475
    %v602 = vunpack.c.l.b16 %v476
    %v603 = vunpack.c.h.b16 %v476
    %v604 = vunpack.c.l.b16 %v477
    %v605 = vunpack.c.h.b16 %v477
    %v606 = vunpack.c.l.b16 %v478
    %v607 = vunpack.c.h.b16 %v478
    %v608 = vunpack.c.l.b16 %v479
    %v609 = vunpack.c.h.b16 %v479
    %v610 = vunpack.c.l.b16 %v480
    %v611 = vunpack.c.h.b16 %v480
    %v612 = vunpack.c.l.b16 %v481
    %v613 = vunpack.c.h.b16 %v481
    %v614 = vpack.c.b16 %v582, %v580
    %v615 = vpack.c.b16 %v583, %v581
    %v616 = vpack.c.b16 %v586, %v584
    %v617 = vpack.c.b16 %v587, %v585
    %v618 = vpack.c.b16 %v590, %v588
    %v619 = vpack.c.b16 %v591, %v589
    %v620 = vpack.c.b16 %v594, %v592
    %v621 = vpack.c.b16 %v595, %v593
    %v622 = vpack.c.b16 %v598, %v596
    %v623 = vpack.c.b16 %v599, %v597
    %v624 = vpack.c.b16 %v602, %v600
    %v625 = vpack.c.b16 %v603, %v601
    %v626 = vpack.c.b16 %v606, %v604
    %v627 = vpack.c.b16 %v607, %v605
    %v628 = vpack.c.b16 %v610, %v608
    %v629 = vpack.c.b16 %v611, %v609
    %v630 = vpack.c.b16 %v612, %v612
    %v631 = vpack.c.b16 %v613, %v613
    %v649 = vsel %vm395, %v630, 0
    %v652 = vsel %vm395, %v631, 0
    %654 = vmatprep.subr.bf16.mxu0 %v615
    %655 = vmatpush1.bf16.msra.mxu0 %v614
    %656 = vmatprep.subr.bf16.mxu0 %v617
    %657 = vmatpush1.bf16.msra.mxu0 %v616
    %658 = vmatprep.subr.bf16.mxu0 %v619
    %659 = vmatpush1.bf16.msra.mxu0 %v618
    %660 = vmatprep.subr.bf16.mxu0 %v621
    %661 = vmatpush1.bf16.msra.mxu0 %v620
    %662 = vmatprep.subr.bf16.mxu0 %v623
    %663 = vmatpush1.bf16.msra.mxu0 %v622
    %664 = vmatprep.subr.bf16.mxu0 %v625
    %665 = vmatpush1.bf16.msra.mxu0 %v624
    %666 = vmatprep.subr.bf16.mxu0 %v627
    %667 = vmatpush1.bf16.msra.mxu0 %v626
    %668 = vmatprep.subr.bf16.mxu0 %v629
    %669 = vmatpush1.bf16.msra.mxu0 %v628
    %670 = vmatprep.subr.bf16.mxu0 %v652
    %671 = vmatpush1.bf16.msra.mxu0 %v649
    %672 = vmatprep.subr.bf16.mxu0 0
    %673 = vmatpush1.bf16.msra.mxu0 0
    %674 = vmatprep.subr.bf16.mxu0 0
    %675 = vmatpush1.bf16.msra.mxu0 0
    %676 = vmatprep.subr.bf16.mxu0 0
    %677 = vmatpush1.bf16.msra.mxu0 0
    %678 = vmatprep.subr.bf16.mxu0 0
    %679 = vmatpush1.bf16.msra.mxu0 0
    %680 = vmatprep.subr.bf16.mxu0 0
    %681 = vmatpush1.bf16.msra.mxu0 0
    %682 = vmatprep.subr.bf16.mxu0 0
    %683 = vmatpush1.bf16.msra.mxu0 0
    %684 = vmatprep.subr.bf16.mxu0 0
    %685 = vmatpush1.bf16.msra.mxu0 0
    %686 = vmatprep.mubr.bf16.mxu0 %v393
    %687 = vmatmul.mubr.bf16.gmra.mrb[0].mxu0 %v199
    %v688 = vpop.f32.mrb[0].mxu0
    %v689 = vadd.f32 %v557, %v688
    %v690 = vpop.f32.mrb[0].mxu0
    %v691 = vadd.f32 %v559, %v690
    %v692 = vpop.f32.mrb[0].mxu0
    %v693 = vpop.f32.mrb[0].mxu0
    %694 = vdwg.mxu0
    %v695 = vld [vmem:[#allocation13] sm:$0xff]
    %v696 = vld [vmem:[#allocation13 + $0x8] sm:$0xff]
    %v697 = vld [vmem:[#allocation13 + $0x10] sm:$0xff]
    %v698 = vld [vmem:[#allocation13 + $0x18] sm:$0xff]
    %v699 = vld [vmem:[#allocation13 + $0x20] sm:$0xff]
    %v700 = vld [vmem:[#allocation13 + $0x28] sm:$0xff]
    %v701 = vld [vmem:[#allocation13 + $0x30] sm:$0xff]
    %v702 = vld [vmem:[#allocation13 + $0x38] sm:$0xff]
    %v703 = vld [vmem:[#allocation13 + $0x40] sm:$0xff]
    %v704 = vld [vmem:[#allocation13 + $0x48] sm:$0xff]
    %v705 = vld [vmem:[#allocation13 + $0x50] sm:$0xff]
    %v706 = vld [vmem:[#allocation13 + $0x58] sm:$0xff]
    %v707 = vld [vmem:[#allocation13 + $0x60] sm:$0xff]
    %v708 = vld [vmem:[#allocation13 + $0x68] sm:$0xff]
    %v709 = vld [vmem:[#allocation13 + $0x70] sm:$0xff]
    %v710 = vld [vmem:[#allocation13 + $0x78] sm:$0xff]
    %v711 = vld [vmem:[#allocation13 + $0x80] sm:$0xff]
    %v712 = vld [vmem:[#allocation13 + $0x88] sm:$0xff]
    %v713 = vld [vmem:[#allocation13 + $0x90] sm:$0xff]
    %v714 = vld [vmem:[#allocation13 + $0x98] sm:$0xff]
    %v715 = vld [vmem:[#allocation13 + $0xa0] sm:$0xff]
    %v716 = vld [vmem:[#allocation13 + $0xa8] sm:$0xff]
    %v717 = vld [vmem:[#allocation13 + $0xb0] sm:$0xff]
    %v718 = vld [vmem:[#allocation13 + $0xb8] sm:$0xff]
    %v719 = vld [vmem:[#allocation13 + $0xc0] sm:$0xff]
    %v720 = vld [vmem:[#allocation13 + $0xc8] sm:$0xff]
    %v721 = vld [vmem:[#allocation13 + $0xd0] sm:$0xff]
    %v722 = vld [vmem:[#allocation13 + $0xd8] sm:$0xff]
    %v723 = vld [vmem:[#allocation13 + $0xe0] sm:$0xff]
    %v724 = vld [vmem:[#allocation13 + $0xe8] sm:$0xff]
    %v725 = vld [vmem:[#allocation13 + $0xf0] sm:$0xff]
    %v726 = vld [vmem:[#allocation13 + $0xf8] sm:$0xff]
    %v759 = vunpack.c.l.b16 %v695
    %v760 = vunpack.c.h.b16 %v695
    %v761 = vunpack.c.l.b16 %v696
    %v762 = vunpack.c.h.b16 %v696
    %v763 = vunpack.c.l.b16 %v697
    %v764 = vunpack.c.h.b16 %v697
    %v765 = vunpack.c.l.b16 %v698
    %v766 = vunpack.c.h.b16 %v698
    %v767 = vunpack.c.l.b16 %v699
    %v768 = vunpack.c.h.b16 %v699
    %v769 = vunpack.c.l.b16 %v700
    %v770 = vunpack.c.h.b16 %v700
    %v771 = vunpack.c.l.b16 %v701
    %v772 = vunpack.c.h.b16 %v701
    %v773 = vunpack.c.l.b16 %v702
    %v774 = vunpack.c.h.b16 %v702
    %v775 = vunpack.c.l.b16 %v703
    %v776 = vunpack.c.h.b16 %v703
    %v777 = vunpack.c.l.b16 %v704
    %v778 = vunpack.c.h.b16 %v704
    %v779 = vunpack.c.l.b16 %v705
    %v780 = vunpack.c.h.b16 %v705
    %v781 = vunpack.c.l.b16 %v706
    %v782 = vunpack.c.h.b16 %v706
    %v783 = vunpack.c.l.b16 %v707
    %v784 = vunpack.c.h.b16 %v707
    %v785 = vunpack.c.l.b16 %v708
    %v786 = vunpack.c.h.b16 %v708
    %v787 = vunpack.c.l.b16 %v709
    %v788 = vunpack.c.h.b16 %v709
    %v789 = vunpack.c.l.b16 %v710
    %v790 = vunpack.c.h.b16 %v710
    %v791 = vunpack.c.l.b16 %v711
    %v792 = vunpack.c.h.b16 %v711
    %v793 = vunpack.c.l.b16 %v712
    %v794 = vunpack.c.h.b16 %v712
    %v795 = vunpack.c.l.b16 %v713
    %v796 = vunpack.c.h.b16 %v713
    %v797 = vunpack.c.l.b16 %v714
    %v798 = vunpack.c.h.b16 %v714
    %v799 = vunpack.c.l.b16 %v715
    %v800 = vunpack.c.h.b16 %v715
    %v801 = vunpack.c.l.b16 %v716
    %v802 = vunpack.c.h.b16 %v716
    %v803 = vunpack.c.l.b16 %v717
    %v804 = vunpack.c.h.b16 %v717
    %v805 = vunpack.c.l.b16 %v718
    %v806 = vunpack.c.h.b16 %v718
    %v807 = vunpack.c.l.b16 %v719
    %v808 = vunpack.c.h.b16 %v719
    %v809 = vunpack.c.l.b16 %v720
    %v810 = vunpack.c.h.b16 %v720
    %v811 = vunpack.c.l.b16 %v721
    %v812 = vunpack.c.h.b16 %v721
    %v813 = vunpack.c.l.b16 %v722
    %v814 = vunpack.c.h.b16 %v722
    %v815 = vunpack.c.l.b16 %v723
    %v816 = vunpack.c.h.b16 %v723
    %v817 = vunpack.c.l.b16 %v724
    %v818 = vunpack.c.h.b16 %v724
    %v819 = vunpack.c.l.b16 %v725
    %v820 = vunpack.c.h.b16 %v725
    %v821 = vunpack.c.l.b16 %v726
    %v822 = vunpack.c.h.b16 %v726
    %v823 = vpack.c.b16 %v761, %v759
    %v824 = vpack.c.b16 %v762, %v760
    %v825 = vpack.c.b16 %v765, %v763
    %v826 = vpack.c.b16 %v766, %v764
    %v827 = vpack.c.b16 %v769, %v767
    %v828 = vpack.c.b16 %v770, %v768
    %v829 = vpack.c.b16 %v773, %v771
    %v830 = vpack.c.b16 %v774, %v772
    %v831 = vpack.c.b16 %v777, %v775
    %v832 = vpack.c.b16 %v778, %v776
    %v833 = vpack.c.b16 %v781, %v779
    %v834 = vpack.c.b16 %v782, %v780
    %v835 = vpack.c.b16 %v785, %v783
    %v836 = vpack.c.b16 %v786, %v784
    %v837 = vpack.c.b16 %v789, %v787
    %v838 = vpack.c.b16 %v790, %v788
    %v839 = vpack.c.b16 %v793, %v791
    %v840 = vpack.c.b16 %v794, %v792
    %v841 = vpack.c.b16 %v797, %v795
    %v842 = vpack.c.b16 %v798, %v796
    %v843 = vpack.c.b16 %v801, %v799
    %v844 = vpack.c.b16 %v802, %v800
    %v845 = vpack.c.b16 %v805, %v803
    %v846 = vpack.c.b16 %v806, %v804
    %v847 = vpack.c.b16 %v809, %v807
    %v848 = vpack.c.b16 %v810, %v808
    %v849 = vpack.c.b16 %v813, %v811
    %v850 = vpack.c.b16 %v814, %v812
    %v851 = vpack.c.b16 %v817, %v815
    %v852 = vpack.c.b16 %v818, %v816
    %v853 = vpack.c.b16 %v821, %v819
    %v854 = vpack.c.b16 %v822, %v820
    %887 = vmatprep.subr.bf16.mxu0 %v824
    %888 = vmatpush1.bf16.msra.mxu0 %v823
    %889 = vmatprep.subr.bf16.mxu0 %v826
    %890 = vmatpush1.bf16.msra.mxu0 %v825
    %891 = vmatprep.subr.bf16.mxu0 %v828
    %892 = vmatpush1.bf16.msra.mxu0 %v827
    %893 = vmatprep.subr.bf16.mxu0 %v830
    %894 = vmatpush1.bf16.msra.mxu0 %v829
    %895 = vmatprep.subr.bf16.mxu0 %v832
    %896 = vmatpush1.bf16.msra.mxu0 %v831
    %897 = vmatprep.subr.bf16.mxu0 %v834
    %898 = vmatpush1.bf16.msra.mxu0 %v833
    %899 = vmatprep.subr.bf16.mxu0 %v836
    %900 = vmatpush1.bf16.msra.mxu0 %v835
    %901 = vmatprep.subr.bf16.mxu0 %v838
    %902 = vmatpush1.bf16.msra.mxu0 %v837
    %903 = vmatprep.subr.bf16.mxu0 %v840
    %904 = vmatpush1.bf16.msra.mxu0 %v839
    %905 = vmatprep.subr.bf16.mxu0 %v842
    %906 = vmatpush1.bf16.msra.mxu0 %v841
    %907 = vmatprep.subr.bf16.mxu0 %v844
    %908 = vmatpush1.bf16.msra.mxu0 %v843
    %909 = vmatprep.subr.bf16.mxu0 %v846
    %910 = vmatpush1.bf16.msra.mxu0 %v845
    %911 = vmatprep.subr.bf16.mxu0 %v848
    %912 = vmatpush1.bf16.msra.mxu0 %v847
    %913 = vmatprep.subr.bf16.mxu0 %v850
    %914 = vmatpush1.bf16.msra.mxu0 %v849
    %915 = vmatprep.subr.bf16.mxu0 %v852
    %916 = vmatpush1.bf16.msra.mxu0 %v851
    %917 = vmatprep.subr.bf16.mxu0 %v854
    %918 = vmatpush1.bf16.msra.mxu0 %v853
    %919 = vmatprep.mubr.bf16.mxu0 %v464
    %920 = vmatmul.mubr.bf16.gmra.mrb[0].mxu0 %v463
    %v921 = vpop.f32.mrb[0].mxu0
    %v922 = vadd.f32 0.0, %v921
    %v923 = vpop.f32.mrb[0].mxu0
    %v924 = vadd.f32 0.0, %v923
    %v925 = vpop.f32.mrb[0].mxu0
    %v926 = vpop.f32.mrb[0].mxu0
    %927 = vdwg.mxu0
    %v928 = vadd.f32 %v689, %v922
    %v929 = vadd.f32 %v691, %v924
    %v930 = vld [vmem:[%s8] sm:$0x3]
    %v932 = vlaneseq
    %v933 = vshrl.u32 %v932, 7
    %v934 = vsub.s32 0, %v933
    %v935 = vrot.slane %v930, %v934
    %v936 = vlaneseq
    %v937 = vshrl.u32 %v936, 7
    %v938 = vsub.s32 1, %v937
    %v939 = vrot.slane %v930, %v938
    %v942 = vadd.f32 %v928, %v935
    %v943 = vadd.f32 %v929, %v939
    %vm944 = vcmp.gt.f32.partialorder %v942, 0.0
    %vm945 = vcmp.gt.f32.partialorder %v943, 0.0
    %v946 = vmul.f32 %v942, 0.01
    %v947 = vmul.f32 %v943, 0.01
    %v948 = vsel %vm944, %v942, %v946
    %v949 = vsel %vm945, %v943, %v947
    %v950 = vpack.c.bf16 %v948, %v948
    %v951 = vpack.c.bf16 %v949, %v949
    %v952 = vld [vmem:[#allocation14] sm:$0xff]
    %v953 = vld [vmem:[#allocation14 + $0x8] sm:$0xff]
    %v954 = vld [vmem:[#allocation14 + $0x10] sm:$0xff]
    %v955 = vld [vmem:[#allocation14 + $0x18] sm:$0xff]
    %v956 = vld [vmem:[#allocation14 + $0x20] sm:$0xff]
    %v957 = vld [vmem:[#allocation14 + $0x28] sm:$0xff]
    %v958 = vld [vmem:[#allocation14 + $0x30] sm:$0xff]
    %v959 = vld [vmem:[#allocation14 + $0x38] sm:$0xff]
    %v960 = vld [vmem:[#allocation14 + $0x40] sm:$0xff]
    %v961 = vld [vmem:[#allocation14 + $0x48] sm:$0xff]
    %v962 = vld [vmem:[#allocation14 + $0x50] sm:$0xff]
    %v963 = vld [vmem:[#allocation14 + $0x58] sm:$0xff]
    %v964 = vld [vmem:[#allocation14 + $0x60] sm:$0xff]
    %v965 = vld [vmem:[#allocation14 + $0x68] sm:$0xff]
    %v966 = vld [vmem:[#allocation14 + $0x70] sm:$0xff]
    %v967 = vld [vmem:[#allocation14 + $0x78] sm:$0xff]
    %v968 = vld [vmem:[#allocation14 + $0x80] sm:$0xff]
    %v969 = vld [vmem:[#allocation14 + $0x88] sm:$0xff]
    %v970 = vld [vmem:[#allocation14 + $0x90] sm:$0xff]
    %v971 = vld [vmem:[#allocation14 + $0x98] sm:$0xff]
    %v972 = vld [vmem:[#allocation14 + $0xa0] sm:$0xff]
    %v973 = vld [vmem:[#allocation14 + $0xa8] sm:$0xff]
    %v974 = vld [vmem:[#allocation14 + $0xb0] sm:$0xff]
    %v975 = vld [vmem:[#allocation14 + $0xb8] sm:$0xff]
    %v976 = vld [vmem:[#allocation14 + $0xc0] sm:$0xff]
    %v977 = vld [vmem:[#allocation14 + $0xc8] sm:$0xff]
    %v978 = vld [vmem:[#allocation14 + $0xd0] sm:$0xff]
    %v979 = vld [vmem:[#allocation14 + $0xd8] sm:$0xff]
    %v980 = vld [vmem:[#allocation14 + $0xe0] sm:$0xff]
    %v981 = vld [vmem:[#allocation14 + $0xe8] sm:$0xff]
    %v982 = vld [vmem:[#allocation14 + $0xf0] sm:$0xff]
    %v983 = vld [vmem:[#allocation14 + $0xf8] sm:$0xff]
    %v984 = vld [vmem:[#allocation16] sm:$0xff]
    %v985 = vld [vmem:[#allocation16 + $0x8] sm:$0xff]
    %v986 = vld [vmem:[#allocation16 + $0x10] sm:$0xff]
    %v987 = vld [vmem:[#allocation16 + $0x18] sm:$0xff]
    %v988 = vld [vmem:[#allocation16 + $0x20] sm:$0xff]
    %v989 = vld [vmem:[#allocation16 + $0x28] sm:$0xff]
    %v990 = vld [vmem:[#allocation16 + $0x30] sm:$0xff]
    %v991 = vld [vmem:[#allocation16 + $0x38] sm:$0xff]
    %v992 = vld [vmem:[#allocation16 + $0x40] sm:$0xff]
    %v993 = vld [vmem:[#allocation16 + $0x48] sm:$0xff]
    %v994 = vld [vmem:[#allocation16 + $0x50] sm:$0xff]
    %v995 = vld [vmem:[#allocation16 + $0x58] sm:$0xff]
    %v996 = vld [vmem:[#allocation16 + $0x60] sm:$0xff]
    %v997 = vld [vmem:[#allocation16 + $0x68] sm:$0xff]
    %v998 = vld [vmem:[#allocation16 + $0x70] sm:$0xff]
    %v999 = vld [vmem:[#allocation16 + $0x78] sm:$0xff]
    %v1000 = vld [vmem:[#allocation16 + $0x80] sm:$0xff]
    %v1001 = vld [vmem:[#allocation16 + $0x88] sm:$0xff]
    %v1002 = vld [vmem:[#allocation16 + $0x90] sm:$0xff]
    %v1003 = vld [vmem:[#allocation16 + $0x98] sm:$0xff]
    %v1004 = vld [vmem:[#allocation16 + $0xa0] sm:$0xff]
    %v1005 = vld [vmem:[#allocation16 + $0xa8] sm:$0xff]
    %v1006 = vld [vmem:[#allocation16 + $0xb0] sm:$0xff]
    %v1007 = vld [vmem:[#allocation16 + $0xb8] sm:$0xff]
    %v1008 = vld [vmem:[#allocation16 + $0xc0] sm:$0xff]
    %v1009 = vld [vmem:[#allocation16 + $0xc8] sm:$0xff]
    %v1010 = vld [vmem:[#allocation16 + $0xd0] sm:$0xff]
    %v1011 = vld [vmem:[#allocation16 + $0xd8] sm:$0xff]
    %v1012 = vld [vmem:[#allocation16 + $0xe0] sm:$0xff]
    %v1013 = vld [vmem:[#allocation16 + $0xe8] sm:$0xff]
    %v1014 = vld [vmem:[#allocation16 + $0xf0] sm:$0xff]
    %v1015 = vld [vmem:[#allocation16 + $0xf8] sm:$0xff]
    %v1048 = vunpack.c.l.b16 %v984
    %v1049 = vunpack.c.h.b16 %v984
    %v1050 = vunpack.c.l.b16 %v985
    %v1051 = vunpack.c.h.b16 %v985
    %v1052 = vunpack.c.l.b16 %v986
    %v1053 = vunpack.c.h.b16 %v986
    %v1054 = vunpack.c.l.b16 %v987
    %v1055 = vunpack.c.h.b16 %v987
    %v1056 = vunpack.c.l.b16 %v988
    %v1057 = vunpack.c.h.b16 %v988
    %v1058 = vunpack.c.l.b16 %v989
    %v1059 = vunpack.c.h.b16 %v989
    %v1060 = vunpack.c.l.b16 %v990
    %v1061 = vunpack.c.h.b16 %v990
    %v1062 = vunpack.c.l.b16 %v991
    %v1063 = vunpack.c.h.b16 %v991
    %v1064 = vunpack.c.l.b16 %v992
    %v1065 = vunpack.c.h.b16 %v992
    %v1066 = vunpack.c.l.b16 %v993
    %v1067 = vunpack.c.h.b16 %v993
    %v1068 = vunpack.c.l.b16 %v994
    %v1069 = vunpack.c.h.b16 %v994
    %v1070 = vunpack.c.l.b16 %v995
    %v1071 = vunpack.c.h.b16 %v995
    %v1072 = vunpack.c.l.b16 %v996
    %v1073 = vunpack.c.h.b16 %v996
    %v1074 = vunpack.c.l.b16 %v997
    %v1075 = vunpack.c.h.b16 %v997
    %v1076 = vunpack.c.l.b16 %v998
    %v1077 = vunpack.c.h.b16 %v998
    %v1078 = vunpack.c.l.b16 %v999
    %v1079 = vunpack.c.h.b16 %v999
    %v1080 = vunpack.c.l.b16 %v1000
    %v1081 = vunpack.c.h.b16 %v1000
    %v1082 = vunpack.c.l.b16 %v1001
    %v1083 = vunpack.c.h.b16 %v1001
    %v1084 = vunpack.c.l.b16 %v1002
    %v1085 = vunpack.c.h.b16 %v1002
    %v1086 = vunpack.c.l.b16 %v1003
    %v1087 = vunpack.c.h.b16 %v1003
    %v1088 = vunpack.c.l.b16 %v1004
    %v1089 = vunpack.c.h.b16 %v1004
    %v1090 = vunpack.c.l.b16 %v1005
    %v1091 = vunpack.c.h.b16 %v1005
    %v1092 = vunpack.c.l.b16 %v1006
    %v1093 = vunpack.c.h.b16 %v1006
    %v1094 = vunpack.c.l.b16 %v1007
    %v1095 = vunpack.c.h.b16 %v1007
    %v1096 = vunpack.c.l.b16 %v1008
    %v1097 = vunpack.c.h.b16 %v1008
    %v1098 = vunpack.c.l.b16 %v1009
    %v1099 = vunpack.c.h.b16 %v1009
    %v1100 = vunpack.c.l.b16 %v1010
    %v1101 = vunpack.c.h.b16 %v1010
    %v1102 = vunpack.c.l.b16 %v1011
    %v1103 = vunpack.c.h.b16 %v1011
    %v1104 = vunpack.c.l.b16 %v1012
    %v1105 = vunpack.c.h.b16 %v1012
    %v1106 = vunpack.c.l.b16 %v1013
    %v1107 = vunpack.c.h.b16 %v1013
    %v1108 = vunpack.c.l.b16 %v1014
    %v1109 = vunpack.c.h.b16 %v1014
    %v1110 = vunpack.c.l.b16 %v1015
    %v1111 = vunpack.c.h.b16 %v1015
    %v1112 = vpack.c.b16 %v1050, %v1048
    %v1113 = vpack.c.b16 %v1051, %v1049
    %v1114 = vpack.c.b16 %v1054, %v1052
    %v1115 = vpack.c.b16 %v1055, %v1053
    %v1116 = vpack.c.b16 %v1058, %v1056
    %v1117 = vpack.c.b16 %v1059, %v1057
    %v1118 = vpack.c.b16 %v1062, %v1060
    %v1119 = vpack.c.b16 %v1063, %v1061
    %v1120 = vpack.c.b16 %v1066, %v1064
    %v1121 = vpack.c.b16 %v1067, %v1065
    %v1122 = vpack.c.b16 %v1070, %v1068
    %v1123 = vpack.c.b16 %v1071, %v1069
    %v1124 = vpack.c.b16 %v1074, %v1072
    %v1125 = vpack.c.b16 %v1075, %v1073
    %v1126 = vpack.c.b16 %v1078, %v1076
    %v1127 = vpack.c.b16 %v1079, %v1077
    %v1128 = vpack.c.b16 %v1082, %v1080
    %v1129 = vpack.c.b16 %v1083, %v1081
    %v1130 = vpack.c.b16 %v1086, %v1084
    %v1131 = vpack.c.b16 %v1087, %v1085
    %v1132 = vpack.c.b16 %v1090, %v1088
    %v1133 = vpack.c.b16 %v1091, %v1089
    %v1134 = vpack.c.b16 %v1094, %v1092
    %v1135 = vpack.c.b16 %v1095, %v1093
    %v1136 = vpack.c.b16 %v1098, %v1096
    %v1137 = vpack.c.b16 %v1099, %v1097
    %v1138 = vpack.c.b16 %v1102, %v1100
    %v1139 = vpack.c.b16 %v1103, %v1101
    %v1140 = vpack.c.b16 %v1106, %v1104
    %v1141 = vpack.c.b16 %v1107, %v1105
    %v1142 = vpack.c.b16 %v1110, %v1108
    %v1143 = vpack.c.b16 %v1111, %v1109
    %1176 = vmatprep.subr.bf16.mxu0 %v1113
    %1177 = vmatpush1.bf16.msra.mxu0 %v1112
    %1178 = vmatprep.subr.bf16.mxu0 %v1115
    %1179 = vmatpush1.bf16.msra.mxu0 %v1114
    %1180 = vmatprep.subr.bf16.mxu0 %v1117
    %1181 = vmatpush1.bf16.msra.mxu0 %v1116
    %1182 = vmatprep.subr.bf16.mxu0 %v1119
    %1183 = vmatpush1.bf16.msra.mxu0 %v1118
    %1184 = vmatprep.subr.bf16.mxu0 %v1121
    %1185 = vmatpush1.bf16.msra.mxu0 %v1120
    %1186 = vmatprep.subr.bf16.mxu0 %v1123
    %1187 = vmatpush1.bf16.msra.mxu0 %v1122
    %1188 = vmatprep.subr.bf16.mxu0 %v1125
    %1189 = vmatpush1.bf16.msra.mxu0 %v1124
    %1190 = vmatprep.subr.bf16.mxu0 %v1127
    %1191 = vmatpush1.bf16.msra.mxu0 %v1126
    %1192 = vmatprep.subr.bf16.mxu0 %v1129
    %1193 = vmatpush1.bf16.msra.mxu0 %v1128
    %1194 = vmatprep.subr.bf16.mxu0 %v1131
    %1195 = vmatpush1.bf16.msra.mxu0 %v1130
    %1196 = vmatprep.subr.bf16.mxu0 %v1133
    %1197 = vmatpush1.bf16.msra.mxu0 %v1132
    %1198 = vmatprep.subr.bf16.mxu0 %v1135
    %1199 = vmatpush1.bf16.msra.mxu0 %v1134
    %1200 = vmatprep.subr.bf16.mxu0 %v1137
    %1201 = vmatpush1.bf16.msra.mxu0 %v1136
    %1202 = vmatprep.subr.bf16.mxu0 %v1139
    %1203 = vmatpush1.bf16.msra.mxu0 %v1138
    %1204 = vmatprep.subr.bf16.mxu0 %v1141
    %1205 = vmatpush1.bf16.msra.mxu0 %v1140
    %1206 = vmatprep.subr.bf16.mxu0 %v1143
    %1207 = vmatpush1.bf16.msra.mxu0 %v1142
    %1208 = vmatprep.mubr.bf16.mxu0 %v951
    %1209 = vmatmul.mubr.bf16.gmra.mrb[0].mxu0 %v950
    %v1210 = vpop.f32.mrb[0].mxu0
    %v1211 = vadd.f32 0.0, %v1210
    %v1212 = vpop.f32.mrb[0].mxu0
    %v1213 = vadd.f32 0.0, %v1212
    %v1214 = vpop.f32.mrb[0].mxu0
    %v1215 = vpop.f32.mrb[0].mxu0
    %1216 = vdwg.mxu0
    %v1249 = vunpack.c.l.b16 %v952
    %v1250 = vunpack.c.h.b16 %v952
    %v1251 = vunpack.c.l.b16 %v953
    %v1252 = vunpack.c.h.b16 %v953
    %v1253 = vunpack.c.l.b16 %v954
    %v1254 = vunpack.c.h.b16 %v954
    %v1255 = vunpack.c.l.b16 %v955
    %v1256 = vunpack.c.h.b16 %v955
    %v1257 = vunpack.c.l.b16 %v956
    %v1258 = vunpack.c.h.b16 %v956
    %v1259 = vunpack.c.l.b16 %v957
    %v1260 = vunpack.c.h.b16 %v957
    %v1261 = vunpack.c.l.b16 %v958
    %v1262 = vunpack.c.h.b16 %v958
    %v1263 = vunpack.c.l.b16 %v959
    %v1264 = vunpack.c.h.b16 %v959
    %v1265 = vunpack.c.l.b16 %v960
    %v1266 = vunpack.c.h.b16 %v960
    %v1267 = vunpack.c.l.b16 %v961
    %v1268 = vunpack.c.h.b16 %v961
    %v1269 = vunpack.c.l.b16 %v962
    %v1270 = vunpack.c.h.b16 %v962
    %v1271 = vunpack.c.l.b16 %v963
    %v1272 = vunpack.c.h.b16 %v963
    %v1273 = vunpack.c.l.b16 %v964
    %v1274 = vunpack.c.h.b16 %v964
    %v1275 = vunpack.c.l.b16 %v965
    %v1276 = vunpack.c.h.b16 %v965
    %v1277 = vunpack.c.l.b16 %v966
    %v1278 = vunpack.c.h.b16 %v966
    %v1279 = vunpack.c.l.b16 %v967
    %v1280 = vunpack.c.h.b16 %v967
    %v1281 = vunpack.c.l.b16 %v968
    %v1282 = vunpack.c.h.b16 %v968
    %v1283 = vunpack.c.l.b16 %v969
    %v1284 = vunpack.c.h.b16 %v969
    %v1285 = vunpack.c.l.b16 %v970
    %v1286 = vunpack.c.h.b16 %v970
    %v1287 = vunpack.c.l.b16 %v971
    %v1288 = vunpack.c.h.b16 %v971
    %v1289 = vunpack.c.l.b16 %v972
    %v1290 = vunpack.c.h.b16 %v972
    %v1291 = vunpack.c.l.b16 %v973
    %v1292 = vunpack.c.h.b16 %v973
    %v1293 = vunpack.c.l.b16 %v974
    %v1294 = vunpack.c.h.b16 %v974
    %v1295 = vunpack.c.l.b16 %v975
    %v1296 = vunpack.c.h.b16 %v975
    %v1297 = vunpack.c.l.b16 %v976
    %v1298 = vunpack.c.h.b16 %v976
    %v1299 = vunpack.c.l.b16 %v977
    %v1300 = vunpack.c.h.b16 %v977
    %v1301 = vunpack.c.l.b16 %v978
    %v1302 = vunpack.c.h.b16 %v978
    %v1303 = vunpack.c.l.b16 %v979
    %v1304 = vunpack.c.h.b16 %v979
    %v1305 = vunpack.c.l.b16 %v980
    %v1306 = vunpack.c.h.b16 %v980
    %v1307 = vunpack.c.l.b16 %v981
    %v1308 = vunpack.c.h.b16 %v981
    %v1309 = vunpack.c.l.b16 %v982
    %v1310 = vunpack.c.h.b16 %v982
    %v1311 = vunpack.c.l.b16 %v983
    %v1312 = vunpack.c.h.b16 %v983
    %v1313 = vpack.c.b16 %v1251, %v1249
    %v1314 = vpack.c.b16 %v1252, %v1250
    %v1315 = vpack.c.b16 %v1255, %v1253
    %v1316 = vpack.c.b16 %v1256, %v1254
    %v1317 = vpack.c.b16 %v1259, %v1257
    %v1318 = vpack.c.b16 %v1260, %v1258
    %v1319 = vpack.c.b16 %v1263, %v1261
    %v1320 = vpack.c.b16 %v1264, %v1262
    %v1321 = vpack.c.b16 %v1267, %v1265
    %v1322 = vpack.c.b16 %v1268, %v1266
    %v1323 = vpack.c.b16 %v1271, %v1269
    %v1324 = vpack.c.b16 %v1272, %v1270
    %v1325 = vpack.c.b16 %v1275, %v1273
    %v1326 = vpack.c.b16 %v1276, %v1274
    %v1327 = vpack.c.b16 %v1279, %v1277
    %v1328 = vpack.c.b16 %v1280, %v1278
    %v1329 = vpack.c.b16 %v1283, %v1281
    %v1330 = vpack.c.b16 %v1284, %v1282
    %v1331 = vpack.c.b16 %v1287, %v1285
    %v1332 = vpack.c.b16 %v1288, %v1286
    %v1333 = vpack.c.b16 %v1291, %v1289
    %v1334 = vpack.c.b16 %v1292, %v1290
    %v1335 = vpack.c.b16 %v1295, %v1293
    %v1336 = vpack.c.b16 %v1296, %v1294
    %v1337 = vpack.c.b16 %v1299, %v1297
    %v1338 = vpack.c.b16 %v1300, %v1298
    %v1339 = vpack.c.b16 %v1303, %v1301
    %v1340 = vpack.c.b16 %v1304, %v1302
    %v1341 = vpack.c.b16 %v1307, %v1305
    %v1342 = vpack.c.b16 %v1308, %v1306
    %v1343 = vpack.c.b16 %v1311, %v1309
    %v1344 = vpack.c.b16 %v1312, %v1310
    %1377 = vmatprep.subr.bf16.mxu0 %v1314
    %1378 = vmatpush1.bf16.msra.mxu0 %v1313
    %1379 = vmatprep.subr.bf16.mxu0 %v1316
    %1380 = vmatpush1.bf16.msra.mxu0 %v1315
    %1381 = vmatprep.subr.bf16.mxu0 %v1318
    %1382 = vmatpush1.bf16.msra.mxu0 %v1317
    %1383 = vmatprep.subr.bf16.mxu0 %v1320
    %1384 = vmatpush1.bf16.msra.mxu0 %v1319
    %1385 = vmatprep.subr.bf16.mxu0 %v1322
    %1386 = vmatpush1.bf16.msra.mxu0 %v1321
    %1387 = vmatprep.subr.bf16.mxu0 %v1324
    %1388 = vmatpush1.bf16.msra.mxu0 %v1323
    %1389 = vmatprep.subr.bf16.mxu0 %v1326
    %1390 = vmatpush1.bf16.msra.mxu0 %v1325
    %1391 = vmatprep.subr.bf16.mxu0 %v1328
    %1392 = vmatpush1.bf16.msra.mxu0 %v1327
    %1393 = vmatprep.subr.bf16.mxu0 %v1330
    %1394 = vmatpush1.bf16.msra.mxu0 %v1329
    %1395 = vmatprep.subr.bf16.mxu0 %v1332
    %1396 = vmatpush1.bf16.msra.mxu0 %v1331
    %1397 = vmatprep.subr.bf16.mxu0 %v1334
    %1398 = vmatpush1.bf16.msra.mxu0 %v1333
    %1399 = vmatprep.subr.bf16.mxu0 %v1336
    %1400 = vmatpush1.bf16.msra.mxu0 %v1335
    %1401 = vmatprep.subr.bf16.mxu0 %v1338
    %1402 = vmatpush1.bf16.msra.mxu0 %v1337
    %1403 = vmatprep.subr.bf16.mxu0 %v1340
    %1404 = vmatpush1.bf16.msra.mxu0 %v1339
    %1405 = vmatprep.subr.bf16.mxu0 %v1342
    %1406 = vmatpush1.bf16.msra.mxu0 %v1341
    %1407 = vmatprep.subr.bf16.mxu0 %v1344
    %1408 = vmatpush1.bf16.msra.mxu0 %v1343
    %1409 = vmatprep.mubr.bf16.mxu0 %v464
    %1410 = vmatmul.mubr.bf16.gmra.mrb[0].mxu0 %v463
    %v1411 = vpop.f32.mrb[0].mxu0
    %v1412 = vadd.f32 %v1211, %v1411
    %v1413 = vpop.f32.mrb[0].mxu0
    %v1414 = vadd.f32 %v1213, %v1413
    %v1415 = vpop.f32.mrb[0].mxu0
    %v1416 = vpop.f32.mrb[0].mxu0
    %1417 = vdwg.mxu0
    %v1418 = vld [vmem:[%s11] sm:$0x3]
    %v1420 = vlaneseq
    %v1421 = vshrl.u32 %v1420, 7
    %v1422 = vsub.s32 0, %v1421
    %v1423 = vrot.slane %v1418, %v1422
    %v1424 = vlaneseq
    %v1425 = vshrl.u32 %v1424, 7
    %v1426 = vsub.s32 1, %v1425
    %v1427 = vrot.slane %v1418, %v1426
    %v1430 = vadd.f32 %v1412, %v1423
    %v1431 = vadd.f32 %v1414, %v1427
    %vm1432 = vcmp.gt.f32.partialorder %v1430, 0.0
    %vm1433 = vcmp.gt.f32.partialorder %v1431, 0.0
    %v1434 = vmul.f32 %v1430, 0.01
    %v1435 = vmul.f32 %v1431, 0.01
    %v1436 = vsel %vm1432, %v1430, %v1434
    %v1437 = vsel %vm1433, %v1431, %v1435
    %v1438 = vpack.c.bf16 %v1436, %v1436
    %v1439 = vpack.c.bf16 %v1437, %v1437
    %v1440 = vld [vmem:[#allocation17] sm:$0xf]
    %v1441 = vld [vmem:[#allocation17 + $0x4] sm:$0xf]
    %v1442 = vld [vmem:[#allocation17 + $0x8] sm:$0xf]
    %v1443 = vld [vmem:[#allocation17 + $0xc] sm:$0xf]
    %v1444 = vld [vmem:[#allocation17 + $0x10] sm:$0xf]
    %v1445 = vld [vmem:[#allocation17 + $0x14] sm:$0xf]
    %v1446 = vld [vmem:[#allocation17 + $0x18] sm:$0xf]
    %v1447 = vld [vmem:[#allocation17 + $0x1c] sm:$0xf]
    %v1448 = vld [vmem:[#allocation17 + $0x20] sm:$0xf]
    %v1449 = vld [vmem:[#allocation17 + $0x24] sm:$0xf]
    %v1450 = vld [vmem:[#allocation17 + $0x28] sm:$0xf]
    %v1451 = vld [vmem:[#allocation17 + $0x2c] sm:$0xf]
    %v1452 = vld [vmem:[#allocation17 + $0x30] sm:$0xf]
    %v1453 = vld [vmem:[#allocation17 + $0x34] sm:$0xf]
    %v1454 = vld [vmem:[#allocation17 + $0x38] sm:$0xf]
    %v1455 = vld [vmem:[#allocation17 + $0x3c] sm:$0xf]
    %v1456 = vld [vmem:[#allocation17 + $0x40] sm:$0xf]
    %v1457 = vld [vmem:[#allocation17 + $0x44] sm:$0xf]
    %v1458 = vld [vmem:[#allocation17 + $0x48] sm:$0xf]
    %v1459 = vld [vmem:[#allocation17 + $0x4c] sm:$0xf]
    %v1460 = vld [vmem:[#allocation17 + $0x50] sm:$0xf]
    %v1461 = vld [vmem:[#allocation17 + $0x54] sm:$0xf]
    %v1462 = vld [vmem:[#allocation17 + $0x58] sm:$0xf]
    %v1463 = vld [vmem:[#allocation17 + $0x5c] sm:$0xf]
    %v1464 = vld [vmem:[#allocation17 + $0x60] sm:$0xf]
    %v1465 = vld [vmem:[#allocation17 + $0x64] sm:$0xf]
    %v1466 = vld [vmem:[#allocation17 + $0x68] sm:$0xf]
    %v1467 = vld [vmem:[#allocation17 + $0x6c] sm:$0xf]
    %v1468 = vld [vmem:[#allocation17 + $0x70] sm:$0xf]
    %v1469 = vld [vmem:[#allocation17 + $0x74] sm:$0xf]
    %v1470 = vld [vmem:[#allocation17 + $0x78] sm:$0xf]
    %v1471 = vld [vmem:[#allocation17 + $0x7c] sm:$0xf]
    %v1472 = vld [vmem:[#allocation19] sm:$0xf]
    %v1473 = vld [vmem:[#allocation19 + $0x4] sm:$0xf]
    %v1474 = vld [vmem:[#allocation19 + $0x8] sm:$0xf]
    %v1475 = vld [vmem:[#allocation19 + $0xc] sm:$0xf]
    %v1476 = vld [vmem:[#allocation19 + $0x10] sm:$0xf]
    %v1477 = vld [vmem:[#allocation19 + $0x14] sm:$0xf]
    %v1478 = vld [vmem:[#allocation19 + $0x18] sm:$0xf]
    %v1479 = vld [vmem:[#allocation19 + $0x1c] sm:$0xf]
    %v1480 = vld [vmem:[#allocation19 + $0x20] sm:$0xf]
    %v1481 = vld [vmem:[#allocation19 + $0x24] sm:$0xf]
    %v1482 = vld [vmem:[#allocation19 + $0x28] sm:$0xf]
    %v1483 = vld [vmem:[#allocation19 + $0x2c] sm:$0xf]
    %v1484 = vld [vmem:[#allocation19 + $0x30] sm:$0xf]
    %v1485 = vld [vmem:[#allocation19 + $0x34] sm:$0xf]
    %v1486 = vld [vmem:[#allocation19 + $0x38] sm:$0xf]
    %v1487 = vld [vmem:[#allocation19 + $0x3c] sm:$0xf]
    %v1488 = vld [vmem:[#allocation19 + $0x40] sm:$0xf]
    %v1489 = vld [vmem:[#allocation19 + $0x44] sm:$0xf]
    %v1490 = vld [vmem:[#allocation19 + $0x48] sm:$0xf]
    %v1491 = vld [vmem:[#allocation19 + $0x4c] sm:$0xf]
    %v1492 = vld [vmem:[#allocation19 + $0x50] sm:$0xf]
    %v1493 = vld [vmem:[#allocation19 + $0x54] sm:$0xf]
    %v1494 = vld [vmem:[#allocation19 + $0x58] sm:$0xf]
    %v1495 = vld [vmem:[#allocation19 + $0x5c] sm:$0xf]
    %v1496 = vld [vmem:[#allocation19 + $0x60] sm:$0xf]
    %v1497 = vld [vmem:[#allocation19 + $0x64] sm:$0xf]
    %v1498 = vld [vmem:[#allocation19 + $0x68] sm:$0xf]
    %v1499 = vld [vmem:[#allocation19 + $0x6c] sm:$0xf]
    %v1500 = vld [vmem:[#allocation19 + $0x70] sm:$0xf]
    %v1501 = vld [vmem:[#allocation19 + $0x74] sm:$0xf]
    %v1502 = vld [vmem:[#allocation19 + $0x78] sm:$0xf]
    %v1503 = vld [vmem:[#allocation19 + $0x7c] sm:$0xf]
    %v1536 = vunpack.c.l.b16 %v1472
    %v1537 = vunpack.c.l.b16 %v1473
    %v1538 = vunpack.c.l.b16 %v1474
    %v1539 = vunpack.c.l.b16 %v1475
    %v1540 = vunpack.c.l.b16 %v1476
    %v1541 = vunpack.c.l.b16 %v1477
    %v1542 = vunpack.c.l.b16 %v1478
    %v1543 = vunpack.c.l.b16 %v1479
    %v1544 = vunpack.c.l.b16 %v1480
    %v1545 = vunpack.c.l.b16 %v1481
    %v1546 = vunpack.c.l.b16 %v1482
    %v1547 = vunpack.c.l.b16 %v1483
    %v1548 = vunpack.c.l.b16 %v1484
    %v1549 = vunpack.c.l.b16 %v1485
    %v1550 = vunpack.c.l.b16 %v1486
    %v1551 = vunpack.c.l.b16 %v1487
    %v1552 = vunpack.c.l.b16 %v1488
    %v1553 = vunpack.c.l.b16 %v1489
    %v1554 = vunpack.c.l.b16 %v1490
    %v1555 = vunpack.c.l.b16 %v1491
    %v1556 = vunpack.c.l.b16 %v1492
    %v1557 = vunpack.c.l.b16 %v1493
    %v1558 = vunpack.c.l.b16 %v1494
    %v1559 = vunpack.c.l.b16 %v1495
    %v1560 = vunpack.c.l.b16 %v1496
    %v1561 = vunpack.c.l.b16 %v1497
    %v1562 = vunpack.c.l.b16 %v1498
    %v1563 = vunpack.c.l.b16 %v1499
    %v1564 = vunpack.c.l.b16 %v1500
    %v1565 = vunpack.c.l.b16 %v1501
    %v1566 = vunpack.c.l.b16 %v1502
    %v1567 = vunpack.c.l.b16 %v1503
    %v1568 = vpack.c.b16 %v1537, %v1536
    %v1569 = vpack.c.b16 %v1539, %v1538
    %v1570 = vpack.c.b16 %v1541, %v1540
    %v1571 = vpack.c.b16 %v1543, %v1542
    %v1572 = vpack.c.b16 %v1545, %v1544
    %v1573 = vpack.c.b16 %v1547, %v1546
    %v1574 = vpack.c.b16 %v1549, %v1548
    %v1575 = vpack.c.b16 %v1551, %v1550
    %v1576 = vpack.c.b16 %v1553, %v1552
    %v1577 = vpack.c.b16 %v1555, %v1554
    %v1578 = vpack.c.b16 %v1557, %v1556
    %v1579 = vpack.c.b16 %v1559, %v1558
    %v1580 = vpack.c.b16 %v1561, %v1560
    %v1581 = vpack.c.b16 %v1563, %v1562
    %v1582 = vpack.c.b16 %v1565, %v1564
    %v1583 = vpack.c.b16 %v1567, %v1566
    %1600 = vmatprep.subr.bf16.mxu0 0
    %1601 = vmatpush1.bf16.msra.mxu0 %v1568
    %1602 = vmatprep.subr.bf16.mxu0 0
    %1603 = vmatpush1.bf16.msra.mxu0 %v1569
    %1604 = vmatprep.subr.bf16.mxu0 0
    %1605 = vmatpush1.bf16.msra.mxu0 %v1570
    %1606 = vmatprep.subr.bf16.mxu0 0
    %1607 = vmatpush1.bf16.msra.mxu0 %v1571
    %1608 = vmatprep.subr.bf16.mxu0 0
    %1609 = vmatpush1.bf16.msra.mxu0 %v1572
    %1610 = vmatprep.subr.bf16.mxu0 0
    %1611 = vmatpush1.bf16.msra.mxu0 %v1573
    %1612 = vmatprep.subr.bf16.mxu0 0
    %1613 = vmatpush1.bf16.msra.mxu0 %v1574
    %1614 = vmatprep.subr.bf16.mxu0 0
    %1615 = vmatpush1.bf16.msra.mxu0 %v1575
    %1616 = vmatprep.subr.bf16.mxu0 0
    %1617 = vmatpush1.bf16.msra.mxu0 %v1576
    %1618 = vmatprep.subr.bf16.mxu0 0
    %1619 = vmatpush1.bf16.msra.mxu0 %v1577
    %1620 = vmatprep.subr.bf16.mxu0 0
    %1621 = vmatpush1.bf16.msra.mxu0 %v1578
    %1622 = vmatprep.subr.bf16.mxu0 0
    %1623 = vmatpush1.bf16.msra.mxu0 %v1579
    %1624 = vmatprep.subr.bf16.mxu0 0
    %1625 = vmatpush1.bf16.msra.mxu0 %v1580
    %1626 = vmatprep.subr.bf16.mxu0 0
    %1627 = vmatpush1.bf16.msra.mxu0 %v1581
    %1628 = vmatprep.subr.bf16.mxu0 0
    %1629 = vmatpush1.bf16.msra.mxu0 %v1582
    %1630 = vmatprep.subr.bf16.mxu0 0
    %1631 = vmatpush1.bf16.msra.mxu0 %v1583
    %1632 = vmatprep.mubr.bf16.mxu0 %v1439
    %1633 = vmatmul.mubr.bf16.gmra.mrb[0].mxu0 %v1438
    %v1634 = vpop.f32.mrb[0].mxu0
    %v1635 = vadd.f32 0.0, %v1634
    %v1636 = vpop.f32.mrb[0].mxu0
    %v1637 = vpop.f32.mrb[0].mxu0
    %v1638 = vpop.f32.mrb[0].mxu0
    %1639 = vdwg.mxu0
    %v1672 = vunpack.c.l.b16 %v1440
    %v1673 = vunpack.c.l.b16 %v1441
    %v1674 = vunpack.c.l.b16 %v1442
    %v1675 = vunpack.c.l.b16 %v1443
    %v1676 = vunpack.c.l.b16 %v1444
    %v1677 = vunpack.c.l.b16 %v1445
    %v1678 = vunpack.c.l.b16 %v1446
    %v1679 = vunpack.c.l.b16 %v1447
    %v1680 = vunpack.c.l.b16 %v1448
    %v1681 = vunpack.c.l.b16 %v1449
    %v1682 = vunpack.c.l.b16 %v1450
    %v1683 = vunpack.c.l.b16 %v1451
    %v1684 = vunpack.c.l.b16 %v1452
    %v1685 = vunpack.c.l.b16 %v1453
    %v1686 = vunpack.c.l.b16 %v1454
    %v1687 = vunpack.c.l.b16 %v1455
    %v1688 = vunpack.c.l.b16 %v1456
    %v1689 = vunpack.c.l.b16 %v1457
    %v1690 = vunpack.c.l.b16 %v1458
    %v1691 = vunpack.c.l.b16 %v1459
    %v1692 = vunpack.c.l.b16 %v1460
    %v1693 = vunpack.c.l.b16 %v1461
    %v1694 = vunpack.c.l.b16 %v1462
    %v1695 = vunpack.c.l.b16 %v1463
    %v1696 = vunpack.c.l.b16 %v1464
    %v1697 = vunpack.c.l.b16 %v1465
    %v1698 = vunpack.c.l.b16 %v1466
    %v1699 = vunpack.c.l.b16 %v1467
    %v1700 = vunpack.c.l.b16 %v1468
    %v1701 = vunpack.c.l.b16 %v1469
    %v1702 = vunpack.c.l.b16 %v1470
    %v1703 = vunpack.c.l.b16 %v1471
    %v1704 = vpack.c.b16 %v1673, %v1672
    %v1705 = vpack.c.b16 %v1675, %v1674
    %v1706 = vpack.c.b16 %v1677, %v1676
    %v1707 = vpack.c.b16 %v1679, %v1678
    %v1708 = vpack.c.b16 %v1681, %v1680
    %v1709 = vpack.c.b16 %v1683, %v1682
    %v1710 = vpack.c.b16 %v1685, %v1684
    %v1711 = vpack.c.b16 %v1687, %v1686
    %v1712 = vpack.c.b16 %v1689, %v1688
    %v1713 = vpack.c.b16 %v1691, %v1690
    %v1714 = vpack.c.b16 %v1693, %v1692
    %v1715 = vpack.c.b16 %v1695, %v1694
    %v1716 = vpack.c.b16 %v1697, %v1696
    %v1717 = vpack.c.b16 %v1699, %v1698
    %v1718 = vpack.c.b16 %v1701, %v1700
    %v1719 = vpack.c.b16 %v1703, %v1702
    %1736 = vmatprep.subr.bf16.mxu0 0
    %1737 = vmatpush1.bf16.msra.mxu0 %v1704
    %1738 = vmatprep.subr.bf16.mxu0 0
    %1739 = vmatpush1.bf16.msra.mxu0 %v1705
    %1740 = vmatprep.subr.bf16.mxu0 0
    %1741 = vmatpush1.bf16.msra.mxu0 %v1706
    %1742 = vmatprep.subr.bf16.mxu0 0
    %1743 = vmatpush1.bf16.msra.mxu0 %v1707
    %1744 = vmatprep.subr.bf16.mxu0 0
    %1745 = vmatpush1.bf16.msra.mxu0 %v1708
    %1746 = vmatprep.subr.bf16.mxu0 0
    %1747 = vmatpush1.bf16.msra.mxu0 %v1709
    %1748 = vmatprep.subr.bf16.mxu0 0
    %1749 = vmatpush1.bf16.msra.mxu0 %v1710
    %1750 = vmatprep.subr.bf16.mxu0 0
    %1751 = vmatpush1.bf16.msra.mxu0 %v1711
    %1752 = vmatprep.subr.bf16.mxu0 0
    %1753 = vmatpush1.bf16.msra.mxu0 %v1712
    %1754 = vmatprep.subr.bf16.mxu0 0
    %1755 = vmatpush1.bf16.msra.mxu0 %v1713
    %1756 = vmatprep.subr.bf16.mxu0 0
    %1757 = vmatpush1.bf16.msra.mxu0 %v1714
    %1758 = vmatprep.subr.bf16.mxu0 0
    %1759 = vmatpush1.bf16.msra.mxu0 %v1715
    %1760 = vmatprep.subr.bf16.mxu0 0
    %1761 = vmatpush1.bf16.msra.mxu0 %v1716
    %1762 = vmatprep.subr.bf16.mxu0 0
    %1763 = vmatpush1.bf16.msra.mxu0 %v1717
    %1764 = vmatprep.subr.bf16.mxu0 0
    %1765 = vmatpush1.bf16.msra.mxu0 %v1718
    %1766 = vmatprep.subr.bf16.mxu0 0
    %1767 = vmatpush1.bf16.msra.mxu0 %v1719
    %1768 = vmatprep.mubr.bf16.mxu0 %v951
    %1769 = vmatmul.mubr.bf16.gmra.mrb[0].mxu0 %v950
    %v1770 = vpop.f32.mrb[0].mxu0
    %v1771 = vadd.f32 %v1635, %v1770
    %v1772 = vpop.f32.mrb[0].mxu0
    %v1773 = vpop.f32.mrb[0].mxu0
    %v1774 = vpop.f32.mrb[0].mxu0
    %1775 = vdwg.mxu0
    %v1776 = vld [vmem:[%s14] sm:$0x1]
    %v1778 = vlaneseq
    %v1779 = vshrl.u32 %v1778, 7
    %v1780 = vsub.s32 0, %v1779
    %v1781 = vrot.slane %v1776, %v1780
    %v1783 = vadd.f32 %v1771, %v1781
    %1784 = vst [vmem:[#allocation20] sm:$0xff] %v1783
    // Predicated region
    $region106: #{spikenet_pallas.1} parent=1 // pred_check
      _
    $region107: #{spikenet_pallas.1} parent=1 // pred_check_branch
      %1786 = sbr.rel (0) target = $region109
    $region108: #{spikenet_pallas.1} parent=1 // pred_region
      %s1788 = ssub.s32 128, 128
      %1789 = vsyncadd [#allocation4], %s1788
      %s1791 = sshll.u32 [#allocation20], 4
      %s1792 = int_to_ptr.vmem [resolvable:$true] %s1791
      %1794 = dma.vmem_to_hbm [thread:$0]  %s1792, 128, %s15, [#allocation4]
    $region109: #{spikenet_pallas.1} parent=1 // pred_fallthru
      _
    // Predicated region
    $region110: #{spikenet_pallas.1} parent=1 // pred_check
      _
    $region111: #{spikenet_pallas.1} parent=1 // pred_check_branch
      %1796 = sbr.rel (0) target = $region113
    $region112: #{spikenet_pallas.1} parent=1 // pred_region
      %1797 = dma.done [#allocation4], 128
    $region113: #{spikenet_pallas.1} parent=1 // pred_fallthru
      _
    %1798 = vsyncpa [#allocation3], 1
    %1799 = vsyncpa [#allocation6], 1
    %1800 = vsyncpa [#allocation9], 1
    %1801 = vsyncpa [#allocation12], 1
    %1802 = vsyncpa [#allocation15], 1
    %1803 = vsyncpa [#allocation18], 1
    %1804 = vsyncpa [#allocation4], 1

</llo_original>
